<compile_context>
chip_gen: v6e
topology: v6e:2x2x1
jax: 0.10.0
libtpu: 0.0.40
codegen_flags: <defaults>
</compile_context>

<pallas_src>
import functools

import jax
import jax.numpy as jnp
from jax import lax
from jax.experimental import pallas as pl
from jax.experimental.pallas import tpu as pltpu


# ----------------------------- tiling helpers ------------------------------

def _pick(dim, prefs):
    """Largest preferred tile that exactly divides dim; falls back to dim itself
    (only hit when dim is smaller than every preference, e.g. the toy config)."""
    for p in prefs:
        if p <= dim and dim % p == 0:
            return p
    return dim


def _pick_tk(K):
    """Full contraction for shallow K (single K step), else a large divisor."""
    if K <= 1024:
        return K
    return _pick(K, (1536, 1024, 768, 512, 384, 256, 128))


_VMEM_LIMIT = 48 * 1024 * 1024  # <= v7x 64 MiB/TC physical; plenty on v5e/v6e


# ----------------------------- Pallas kernels ------------------------------

def _dense_kernel(x_ref, w_ref, b_ref, o_ref, *, activation, n_k):
    """One (tm, tn) output tile; f32 accumulation directly into the resident o_ref."""
    part = jnp.dot(x_ref[...].astype(jnp.bfloat16), w_ref[...],
                   preferred_element_type=jnp.float32)

    def epilogue(acc):
        y = acc + b_ref[...]
        if activation == "gelu":
            # exact erf-GELU (matches torch.nn.GELU / HF BERT); erf runs on the EUP
            y = 0.5 * y * (1.0 + lax.erf(y * 0.7071067811865476))
        return y.astype(o_ref.dtype)

    if n_k == 1:
        o_ref[...] = epilogue(part)
    else:
        k = pl.program_id(2)

        @pl.when(k == 0)
        def _():
            o_ref[...] = part

        @pl.when(k > 0)
        def _():
            o_ref[...] += part

        @pl.when(k == n_k - 1)
        def _():
            o_ref[...] = epilogue(o_ref[...])


def dense(x, w, b, activation=None):
    """o = act(x @ w + b); x:(M,K) f32, w:(K,N) bf16, b:(N,) f32. Tiled + pipelined."""
    M, K = x.shape
    _, N = w.shape
    tm = _pick(M, (512, 256, 128))
    tn = _pick(N, (1024, 768, 512, 384, 256, 128))
    tk = _pick_tk(K)
    n_k = K // tk
    return pl.pallas_call(
        functools.partial(_dense_kernel, activation=activation, n_k=n_k),
        out_shape=jax.ShapeDtypeStruct((M, N), x.dtype),
        grid_spec=pltpu.PrefetchScalarGridSpec(
            num_scalar_prefetch=0,
            grid=(M // tm, N // tn, n_k),
            in_specs=[
                pl.BlockSpec((tm, tk), lambda i, j, k: (i, k)),
                pl.BlockSpec((tk, tn), lambda i, j, k: (k, j)),
                pl.BlockSpec((1, tn), lambda i, j, k: (0, j)),
            ],
            out_specs=pl.BlockSpec((tm, tn), lambda i, j, k: (i, j)),
        ),
        compiler_params=pltpu.CompilerParams(
            dimension_semantics=("parallel", "parallel", "arbitrary"),
            vmem_limit_bytes=_VMEM_LIMIT,
        ),
    )(x, w, b.reshape(1, N))


def _dense_add_ln_kernel(x_ref, w_ref, b_ref, r_ref, g_ref, be_ref,
                         o_ref, *, eps, n_k):
    """out = LayerNorm(x @ w + b + residual); N kept whole (full hidden row)."""
    part = jnp.dot(x_ref[...].astype(jnp.bfloat16), w_ref[...],
                   preferred_element_type=jnp.float32)

    def epilogue(acc):
        y = acc + b_ref[...] + r_ref[...].astype(jnp.float32)
        mean = jnp.mean(y, axis=-1, keepdims=True)
        var = jnp.mean((y - mean) ** 2, axis=-1, keepdims=True)
        yn = (y - mean) * lax.rsqrt(var + eps)
        return (yn * g_ref[...] + be_ref[...]).astype(o_ref.dtype)

    if n_k == 1:
        o_ref[...] = epilogue(part)
    else:
        k = pl.program_id(1)

        @pl.when(k == 0)
        def _():
            o_ref[...] = part

        @pl.when(k > 0)
        def _():
            o_ref[...] += part

        @pl.when(k == n_k - 1)
        def _():
            o_ref[...] = epilogue(o_ref[...])


def dense_add_ln(x, w, b, residual, gamma, beta, eps=1e-12):
    """Fused matmul + bias + residual-add + LayerNorm over the last axis."""
    M, K = x.shape
    _, N = w.shape
    # tm <= 256 keeps the full-N residual/output residency v7x-safe at tk>=1024.
    tm = _pick(M, (256, 128))
    tk = _pick_tk(K)
    n_k = K // tk
    return pl.pallas_call(
        functools.partial(_dense_add_ln_kernel, eps=eps, n_k=n_k),
        out_shape=jax.ShapeDtypeStruct((M, N), x.dtype),
        grid_spec=pltpu.PrefetchScalarGridSpec(
            num_scalar_prefetch=0,
            grid=(M // tm, n_k),
            in_specs=[
                pl.BlockSpec((tm, tk), lambda i, k: (i, k)),
                pl.BlockSpec((tk, N), lambda i, k: (k, 0)),
                pl.BlockSpec((1, N), lambda i, k: (0, 0)),
                pl.BlockSpec((tm, N), lambda i, k: (i, 0)),
                pl.BlockSpec((1, N), lambda i, k: (0, 0)),
                pl.BlockSpec((1, N), lambda i, k: (0, 0)),
            ],
            out_specs=pl.BlockSpec((tm, N), lambda i, k: (i, 0)),
        ),
        compiler_params=pltpu.CompilerParams(
            dimension_semantics=("parallel", "arbitrary"),
            vmem_limit_bytes=_VMEM_LIMIT,
        ),
    )(x, w, b.reshape(1, N), residual, gamma.reshape(1, N), beta.reshape(1, N))


def _ln_kernel(x_ref, g_ref, b_ref, o_ref, *, eps):
    x = x_ref[...].astype(jnp.float32)
    mean = jnp.mean(x, axis=-1, keepdims=True)
    var = jnp.mean((x - mean) ** 2, axis=-1, keepdims=True)
    y = (x - mean) * lax.rsqrt(var + eps)
    o_ref[...] = (y * g_ref[...] + b_ref[...]).astype(o_ref.dtype)


def layernorm(x, gamma, beta, eps=1e-12):
    """LayerNorm over last axis; x:(M,H). Used once for the embedding output."""
    M, H = x.shape
    tm = _pick(M, (512, 256, 128))
    return pl.pallas_call(
        functools.partial(_ln_kernel, eps=eps),
        out_shape=jax.ShapeDtypeStruct((M, H), x.dtype),
        grid=(M // tm,),
        in_specs=[
            pl.BlockSpec((tm, H), lambda i: (i, 0)),
            pl.BlockSpec((1, H), lambda i: (0, 0)),
            pl.BlockSpec((1, H), lambda i: (0, 0)),
        ],
        out_specs=pl.BlockSpec((tm, H), lambda i: (i, 0)),
        compiler_params=pltpu.CompilerParams(
            dimension_semantics=("parallel",),
            vmem_limit_bytes=_VMEM_LIMIT,
        ),
    )(x, gamma.reshape(1, H), beta.reshape(1, H))


def _attn_kernel(qkv_ref, bias_ref, o_ref, *, n_heads, d_head):
    """All heads of one batch element. qkv:(S, 3H); bias:(1, S) additive mask.

    The 1/sqrt(Dh) scale is pre-folded into the Q weights, so scores are just the
    raw dot product + mask bias.  Each head's (S, Dh) context is stored into its
    o_ref lane slice as soon as it is computed (no concat, short live ranges).
    TODO(synk): add a query-tile grid axis (flash-style) if S beyond ~1k is needed;
    the (S, S) score temps are unproblematic at BERT's S<=512."""
    qkv = qkv_ref[0]                     # (S, 3H)
    bias = bias_ref[0]                   # (1, S)
    H = n_heads * d_head
    for h in range(n_heads):
        q = qkv[:, h * d_head:(h + 1) * d_head].astype(jnp.bfloat16)
        k = qkv[:, H + h * d_head:H + (h + 1) * d_head].astype(jnp.bfloat16)
        v = qkv[:, 2 * H + h * d_head:2 * H + (h + 1) * d_head].astype(jnp.bfloat16)
        # q @ k^T without materializing a transposed K (contract on dim 1).
        s = lax.dot_general(q, k, (((1,), (1,)), ((), ())),
                            preferred_element_type=jnp.float32)
        s = s + bias                                             # broadcast over rows
        s = s - jnp.max(s, axis=-1, keepdims=True)
        p = jnp.exp(s)
        l = jnp.sum(p, axis=-1, keepdims=True)
        # approx reciprocal runs on the EUP slot; inference-grade (~1e-3 rel err).
        p = p * pl.reciprocal(l, approx=True)
        ctx = jnp.dot(p.astype(jnp.bfloat16), v,
                      preferred_element_type=jnp.float32)
        o_ref[0, :, pl.ds(h * d_head, d_head)] = ctx.astype(o_ref.dtype)


def attention(qkv, mask_bias, n_heads, d_head):
    """qkv:(B, S, 3H), mask_bias:(B, 1, S) additive -> ctx:(B, S, H)."""
    B, S, H3 = qkv.shape
    H = H3 // 3
    return pl.pallas_call(
        functools.partial(_attn_kernel, n_heads=n_heads, d_head=d_head),
        out_shape=jax.ShapeDtypeStruct((B, S, H), qkv.dtype),
        grid=(B,),
        in_specs=[
            pl.BlockSpec((1, S, H3), lambda b: (b, 0, 0)),
            pl.BlockSpec((1, 1, S), lambda b: (b, 0, 0)),
        ],
        out_specs=pl.BlockSpec((1, S, H), lambda b: (b, 0, 0)),
        compiler_params=pltpu.CompilerParams(
            dimension_semantics=("parallel",),
            vmem_limit_bytes=_VMEM_LIMIT,
        ),
    )(qkv, mask_bias)


# ------------------------------ Model (glue) -------------------------------

CFG = dict(
    vocab=100,          # synthetic (real BERT: 30522)
    max_pos=16,
    type_vocab=2,
    hidden=32,          # synthetic (real BERT: 768)
    heads=2,
    intermediate=64,
    layers=2,           # synthetic (real BERT: 12)
    num_labels=5,
)


def init_params(key, cfg):
    # TODO(synk): pretrained 'bert-base-uncased' weights cannot be loaded here;
    # random init with matching structure is used instead.
    H, I, V, P, T, L = (cfg["hidden"], cfg["intermediate"], cfg["vocab"],
                        cfg["max_pos"], cfg["type_vocab"], cfg["num_labels"])
    Dh = H // cfg["heads"]
    scale = 1.0 / float(Dh) ** 0.5

    def nxt():
        nonlocal key
        key, sub = jax.random.split(key)
        return sub

    def w(shape):
        return (0.02 * jax.random.normal(nxt(), shape)).astype(jnp.float32)

    params = {
        "emb": {
            "word": w((V, H)), "pos": w((P, H)), "type": w((T, H)),
            "ln_g": jnp.ones((H,), jnp.float32), "ln_b": jnp.zeros((H,), jnp.float32),
        },
        "layers": [],
        "cls_w": w((H, L)),
        "cls_b": jnp.zeros((L,), jnp.float32),
    }
    for _ in range(cfg["layers"]):
        # fused [Wq | Wk | Wv] along the output axis; the 1/sqrt(Dh) attention scale
        # is folded into the Q block of both weight and bias (free at runtime).
        qkv_w = w((H, 3 * H))
        qkv_w = qkv_w.at[:, :H].multiply(scale)
        qkv_b = jnp.zeros((3 * H,), jnp.float32).at[:H].multiply(scale)
        params["layers"].append({
            "qkv_w": qkv_w.astype(jnp.bfloat16), "qkv_b": qkv_b,
            "ao_w": w((H, H)).astype(jnp.bfloat16), "ao_b": jnp.zeros((H,), jnp.float32),
            "a_ln_g": jnp.ones((H,), jnp.float32), "a_ln_b": jnp.zeros((H,), jnp.float32),
            "i_w": w((H, I)).astype(jnp.bfloat16), "i_b": jnp.zeros((I,), jnp.float32),
            "o_w": w((I, H)).astype(jnp.bfloat16), "o_b": jnp.zeros((H,), jnp.float32),
            "o_ln_g": jnp.ones((H,), jnp.float32), "o_ln_b": jnp.zeros((H,), jnp.float32),
        })
    return params


def multi_label_classifier_forward(params, input_ids, attention_mask, cfg):
    B, S = input_ids.shape
    H, Hh = cfg["hidden"], cfg["heads"]
    Dh = H // Hh

    # --- embeddings: word[ids] + pos + type(0), then LayerNorm (Pallas) ---
    emb = params["emb"]
    word = jnp.take(emb["word"], input_ids, axis=0)                 # (B, S, H)
    pos_type = emb["pos"][:S][None, :, :] + emb["type"][0][None, None, :]
    x = (word + pos_type).reshape(B * S, H)
    h = layernorm(x, emb["ln_g"], emb["ln_b"])                      # (B*S, H)

    # additive attention-mask bias, computed once and reused by every layer/head
    mask_bias = ((1.0 - attention_mask.astype(jnp.float32)) * (-1e9))[:, None, :]

    for lyr in params["layers"]:
        # --- self-attention block ---
        qkv = dense(h, lyr["qkv_w"], lyr["qkv_b"])                  # (B*S, 3H) fused QKV
        ctx = attention(qkv.reshape(B, S, 3 * H), mask_bias, Hh, Dh)  # (B, S, H)
        h = dense_add_ln(ctx.reshape(B * S, H), lyr["ao_w"], lyr["ao_b"],
                         h, lyr["a_ln_g"], lyr["a_ln_b"])           # proj + res + LN
        # --- feed-forward block ---
        inter = dense(h, lyr["i_w"], lyr["i_b"], activation="gelu")
        h = dense_add_ln(inter, lyr["o_w"], lyr["o_b"],
                         h, lyr["o_ln_g"], lyr["o_ln_b"])           # proj + res + LN

    # --- pooled_output = outputs[0][:, 0]  (raw CLS hidden state, as in the spec) ---
    pooled = h.reshape(B, S, H)[:, 0]                               # (B, H)
    # Tiny (B, H) @ (H, num_labels) head: plain XLA beats a pallas_call here.
    logits = pooled @ params["cls_w"] + params["cls_b"]             # (B, num_labels)
    return logits


# ---------------------------------- main ------------------------------------

if __name__ == "__main__":
    key = jax.random.PRNGKey(0)
    pkey, ikey = jax.random.split(key)

    params = init_params(pkey, CFG)

    B, S = 2, 8
    input_ids = jax.random.randint(ikey, (B, S), 0, CFG["vocab"], dtype=jnp.int32)
    attention_mask = jnp.array(
        [[1, 1, 1, 1, 1, 1, 1, 1],
         [1, 1, 1, 1, 1, 0, 0, 0]], dtype=jnp.float32)

    fwd = jax.jit(functools.partial(multi_label_classifier_forward, cfg=CFG))
    logits = fwd(params, input_ids, attention_mask)
    jax.block_until_ready(logits)

    assert logits.shape == (B, CFG["num_labels"])
    assert logits.dtype == jnp.float32
    print("KERNEL_OK")
</pallas_src>

<mosaic_0001>
module attributes {stable_mosaic.version = 11 : i64} {
  func.func @_attn_kernel(%arg0: i32, %arg1: memref<1x8x96xf32, #tpu.memory_space<vmem>>, %arg2: memref<1x1x8xf32, #tpu.memory_space<vmem>>, %arg3: memref<1x8x32xf32, #tpu.memory_space<vmem>>) attributes {dimension_semantics = [#tpu.dimension_semantics<parallel>], iteration_bounds = array<i64: 2>, scalar_prefetch = 0 : i64, scratch_operands = 0 : i64, tpu.core_type = #tpu.core_type<tc>, window_params = [{transform_indices = @transform_0, window_bounds = array<i64: 1, 8, 96>}, {transform_indices = @transform_1, window_bounds = array<i64: 1, 1, 8>}, {transform_indices = @transform_2, window_bounds = array<i64: 1, 8, 32>}]} {
    %c0 = arith.constant 0 : index
    %c0_0 = arith.constant 0 : index
    %c0_1 = arith.constant 0 : index
    %0 = vector.load %arg1[%c0, %c0_0, %c0_1] : memref<1x8x96xf32, #tpu.memory_space<vmem>>, vector<1x8x96xf32>
    %1 = vector.shape_cast %0 : vector<1x8x96xf32> to vector<8x96xf32>
    %c0_2 = arith.constant 0 : index
    %c0_3 = arith.constant 0 : index
    %c0_4 = arith.constant 0 : index
    %2 = vector.load %arg2[%c0_2, %c0_3, %c0_4] : memref<1x1x8xf32, #tpu.memory_space<vmem>>, vector<1x1x8xf32>
    %3 = vector.shape_cast %2 : vector<1x1x8xf32> to vector<1x8xf32>
    %4 = vector.extract_strided_slice %1 {offsets = [0, 0], sizes = [8, 16], strides = [1, 1]} : vector<8x96xf32> to vector<8x16xf32>
    %5 = arith.truncf %4 : vector<8x16xf32> to vector<8x16xbf16>
    %6 = vector.extract_strided_slice %1 {offsets = [0, 32], sizes = [8, 16], strides = [1, 1]} : vector<8x96xf32> to vector<8x16xf32>
    %7 = arith.truncf %6 : vector<8x16xf32> to vector<8x16xbf16>
    %8 = vector.extract_strided_slice %1 {offsets = [0, 64], sizes = [8, 16], strides = [1, 1]} : vector<8x96xf32> to vector<8x16xf32>
    %9 = arith.truncf %8 : vector<8x16xf32> to vector<8x16xbf16>
    %cst = arith.constant dense<0.000000e+00> : vector<8x8xf32>
    %10 = tpu.matmul %5, %7, %cst {dimension_numbers = #tpu.dot_dimension_numbers<[1], [1], [0], [0], [0, 0, 1, 0], [], []>} : vector<8x16xbf16>, vector<8x16xbf16>, vector<8x8xf32> -> vector<8x8xf32>
    %11 = vector.broadcast %3 : vector<1x8xf32> to vector<8x8xf32>
    %12 = arith.addf %10, %11 : vector<8x8xf32>
    %cst_5 = arith.constant dense<0xFF800000> : vector<8xf32>
    %13 = vector.multi_reduction <maximumf>, %12, %cst_5 [1] : vector<8x8xf32> to vector<8xf32>
    %14 = vector.shape_cast %13 : vector<8xf32> to vector<8x1xf32>
    %15 = vector.broadcast %14 : vector<8x1xf32> to vector<8x8xf32>
    %16 = arith.subf %12, %15 : vector<8x8xf32>
    %17 = math.exp %16 : vector<8x8xf32>
    %cst_6 = arith.constant dense<0.000000e+00> : vector<8xf32>
    %18 = vector.multi_reduction <add>, %17, %cst_6 [1] : vector<8x8xf32> to vector<8xf32>
    %19 = vector.shape_cast %18 : vector<8xf32> to vector<8x1xf32>
    %20 = tpu.reciprocal %19 {approx = true} : vector<8x1xf32> -> vector<8x1xf32>
    %21 = vector.broadcast %20 : vector<8x1xf32> to vector<8x8xf32>
    %22 = arith.mulf %17, %21 : vector<8x8xf32>
    %23 = arith.truncf %22 : vector<8x8xf32> to vector<8x8xbf16>
    %cst_7 = arith.constant dense<0.000000e+00> : vector<8x16xf32>
    %24 = tpu.matmul %23, %9, %cst_7 {dimension_numbers = #tpu.dot_dimension_numbers<[1], [0], [0], [1], [0, 0, 1, 1], [], []>} : vector<8x8xbf16>, vector<8x16xbf16>, vector<8x16xf32> -> vector<8x16xf32>
    %c0_8 = arith.constant 0 : index
    %c0_9 = arith.constant 0 : index
    %c0_10 = arith.constant 0 : index
    %25 = vector.load %arg3[%c0_8, %c0_9, %c0_10] : memref<1x8x32xf32, #tpu.memory_space<vmem>>, vector<1x8x16xf32>
    %26 = vector.shape_cast %25 : vector<1x8x16xf32> to vector<8x16xf32>
    %27 = vector.shape_cast %24 : vector<8x16xf32> to vector<1x8x16xf32>
    tpu.vector_store %arg3[%c0_8, %c0_9, %c0_10], %27 {strides = array<i32>} : memref<1x8x32xf32, #tpu.memory_space<vmem>>, vector<1x8x16xf32>,
    %28 = vector.extract_strided_slice %1 {offsets = [0, 16], sizes = [8, 16], strides = [1, 1]} : vector<8x96xf32> to vector<8x16xf32>
    %29 = arith.truncf %28 : vector<8x16xf32> to vector<8x16xbf16>
    %30 = vector.extract_strided_slice %1 {offsets = [0, 48], sizes = [8, 16], strides = [1, 1]} : vector<8x96xf32> to vector<8x16xf32>
    %31 = arith.truncf %30 : vector<8x16xf32> to vector<8x16xbf16>
    %32 = vector.extract_strided_slice %1 {offsets = [0, 80], sizes = [8, 16], strides = [1, 1]} : vector<8x96xf32> to vector<8x16xf32>
    %33 = arith.truncf %32 : vector<8x16xf32> to vector<8x16xbf16>
    %cst_11 = arith.constant dense<0.000000e+00> : vector<8x8xf32>
    %34 = tpu.matmul %29, %31, %cst_11 {dimension_numbers = #tpu.dot_dimension_numbers<[1], [1], [0], [0], [0, 0, 1, 0], [], []>} : vector<8x16xbf16>, vector<8x16xbf16>, vector<8x8xf32> -> vector<8x8xf32>
    %35 = vector.broadcast %3 : vector<1x8xf32> to vector<8x8xf32>
    %36 = arith.addf %34, %35 : vector<8x8xf32>
    %cst_12 = arith.constant dense<0xFF800000> : vector<8xf32>
    %37 = vector.multi_reduction <maximumf>, %36, %cst_12 [1] : vector<8x8xf32> to vector<8xf32>
    %38 = vector.shape_cast %37 : vector<8xf32> to vector<8x1xf32>
    %39 = vector.broadcast %38 : vector<8x1xf32> to vector<8x8xf32>
    %40 = arith.subf %36, %39 : vector<8x8xf32>
    %41 = math.exp %40 : vector<8x8xf32>
    %cst_13 = arith.constant dense<0.000000e+00> : vector<8xf32>
    %42 = vector.multi_reduction <add>, %41, %cst_13 [1] : vector<8x8xf32> to vector<8xf32>
    %43 = vector.shape_cast %42 : vector<8xf32> to vector<8x1xf32>
    %44 = tpu.reciprocal %43 {approx = true} : vector<8x1xf32> -> vector<8x1xf32>
    %45 = vector.broadcast %44 : vector<8x1xf32> to vector<8x8xf32>
    %46 = arith.mulf %41, %45 : vector<8x8xf32>
    %47 = arith.truncf %46 : vector<8x8xf32> to vector<8x8xbf16>
    %cst_14 = arith.constant dense<0.000000e+00> : vector<8x16xf32>
    %48 = tpu.matmul %47, %33, %cst_14 {dimension_numbers = #tpu.dot_dimension_numbers<[1], [0], [0], [1], [0, 0, 1, 1], [], []>} : vector<8x8xbf16>, vector<8x16xbf16>, vector<8x16xf32> -> vector<8x16xf32>
    %c0_15 = arith.constant 0 : index
    %c0_16 = arith.constant 0 : index
    %c16 = arith.constant 16 : index
    %49 = vector.load %arg3[%c0_15, %c0_16, %c16] : memref<1x8x32xf32, #tpu.memory_space<vmem>>, vector<1x8x16xf32>
    %50 = vector.shape_cast %49 : vector<1x8x16xf32> to vector<8x16xf32>
    %51 = vector.shape_cast %48 : vector<8x16xf32> to vector<1x8x16xf32>
    tpu.vector_store %arg3[%c0_15, %c0_16, %c16], %51 {strides = array<i32>} : memref<1x8x32xf32, #tpu.memory_space<vmem>>, vector<1x8x16xf32>,
    return
  }
  func.func @transform_0(%arg0: i32) -> (i32, i32, i32) {
    %c0_i32 = arith.constant 0 : i32
    %c0_i32_0 = arith.constant 0 : i32
    %c0_i32_1 = arith.constant 0 : i32
    return %arg0, %c0_i32, %c0_i32_0 : i32, i32, i32
  }
  func.func @transform_1(%arg0: i32) -> (i32, i32, i32) {
    %c0_i32 = arith.constant 0 : i32
    %c0_i32_0 = arith.constant 0 : i32
    %c0_i32_1 = arith.constant 0 : i32
    return %arg0, %c0_i32, %c0_i32_0 : i32, i32, i32
  }
  func.func @transform_2(%arg0: i32) -> (i32, i32, i32) {
    %c0_i32 = arith.constant 0 : i32
    %c0_i32_0 = arith.constant 0 : i32
    %c0_i32_1 = arith.constant 0 : i32
    return %arg0, %c0_i32, %c0_i32_0 : i32, i32, i32
  }
}

module attributes {stable_mosaic.version = 11 : i64} {
  func.func @_ln_kernel(%arg0: i32, %arg1: memref<16x32xf32, #tpu.memory_space<vmem>>, %arg2: memref<1x32xf32, #tpu.memory_space<vmem>>, %arg3: memref<1x32xf32, #tpu.memory_space<vmem>>, %arg4: memref<16x32xf32, #tpu.memory_space<vmem>>) attributes {dimension_semantics = [#tpu.dimension_semantics<parallel>], iteration_bounds = array<i64: 1>, scalar_prefetch = 0 : i64, scratch_operands = 0 : i64, tpu.core_type = #tpu.core_type<tc>, window_params = [{transform_indices = @transform_0, window_bounds = array<i64: 16, 32>}, {pipeline_mode = #tpu.pipeline_mode<synchronous>, transform_indices = @transform_1, window_bounds = array<i64: 1, 32>}, {pipeline_mode = #tpu.pipeline_mode<synchronous>, transform_indices = @transform_2, window_bounds = array<i64: 1, 32>}, {transform_indices = @transform_3, window_bounds = array<i64: 16, 32>}]} {
    %c0 = arith.constant 0 : index
    %c0_0 = arith.constant 0 : index
    %0 = vector.load %arg1[%c0, %c0_0] : memref<16x32xf32, #tpu.memory_space<vmem>>, vector<16x32xf32>
    %cst = arith.constant dense<0.000000e+00> : vector<16xf32>
    %1 = vector.multi_reduction <add>, %0, %cst [1] : vector<16x32xf32> to vector<16xf32>
    %2 = vector.shape_cast %1 : vector<16xf32> to vector<16x1xf32>
    %cst_1 = arith.constant 3.200000e+01 : f32
    %3 = vector.broadcast %cst_1 : f32 to vector<16x1xf32>
    %4 = arith.divf %2, %3 : vector<16x1xf32>
    %5 = vector.broadcast %4 : vector<16x1xf32> to vector<16x32xf32>
    %6 = arith.subf %0, %5 : vector<16x32xf32>
    %7 = arith.mulf %6, %6 : vector<16x32xf32>
    %cst_2 = arith.constant dense<0.000000e+00> : vector<16xf32>
    %8 = vector.multi_reduction <add>, %7, %cst_2 [1] : vector<16x32xf32> to vector<16xf32>
    %9 = vector.shape_cast %8 : vector<16xf32> to vector<16x1xf32>
    %cst_3 = arith.constant 3.200000e+01 : f32
    %10 = vector.broadcast %cst_3 : f32 to vector<16x1xf32>
    %11 = arith.divf %9, %10 : vector<16x1xf32>
    %12 = vector.broadcast %4 : vector<16x1xf32> to vector<16x32xf32>
    %13 = arith.subf %0, %12 : vector<16x32xf32>
    %cst_4 = arith.constant 9.99999996E-13 : f32
    %14 = vector.broadcast %cst_4 : f32 to vector<16x1xf32>
    %15 = arith.addf %11, %14 : vector<16x1xf32>
    %16 = math.rsqrt %15 : vector<16x1xf32>
    %17 = vector.broadcast %16 : vector<16x1xf32> to vector<16x32xf32>
    %18 = arith.mulf %13, %17 : vector<16x32xf32>
    %c0_5 = arith.constant 0 : index
    %c0_6 = arith.constant 0 : index
    %19 = vector.load %arg2[%c0_5, %c0_6] : memref<1x32xf32, #tpu.memory_space<vmem>>, vector<1x32xf32>
    %20 = vector.broadcast %19 : vector<1x32xf32> to vector<16x32xf32>
    %21 = arith.mulf %18, %20 : vector<16x32xf32>
    %c0_7 = arith.constant 0 : index
    %c0_8 = arith.constant 0 : index
    %22 = vector.load %arg3[%c0_7, %c0_8] : memref<1x32xf32, #tpu.memory_space<vmem>>, vector<1x32xf32>
    %23 = vector.broadcast %22 : vector<1x32xf32> to vector<16x32xf32>
    %24 = arith.addf %21, %23 : vector<16x32xf32>
    %c0_9 = arith.constant 0 : index
    %c0_10 = arith.constant 0 : index
    %25 = vector.load %arg4[%c0_9, %c0_10] : memref<16x32xf32, #tpu.memory_space<vmem>>, vector<16x32xf32>
    tpu.vector_store %arg4[%c0_9, %c0_10], %24 {strides = array<i32>} : memref<16x32xf32, #tpu.memory_space<vmem>>, vector<16x32xf32>,
    return
  }
  func.func @transform_0(%arg0: i32) -> (i32, i32) {
    %c0_i32 = arith.constant 0 : i32
    %c0_i32_0 = arith.constant 0 : i32
    return %arg0, %c0_i32 : i32, i32
  }
  func.func @transform_1(%arg0: i32) -> (i32, i32) {
    %c0_i32 = arith.constant 0 : i32
    %c0_i32_0 = arith.constant 0 : i32
    %c0_i32_1 = arith.constant 0 : i32
    return %c0_i32, %c0_i32_0 : i32, i32
  }
  func.func @transform_2(%arg0: i32) -> (i32, i32) {
    %c0_i32 = arith.constant 0 : i32
    %c0_i32_0 = arith.constant 0 : i32
    %c0_i32_1 = arith.constant 0 : i32
    return %c0_i32, %c0_i32_0 : i32, i32
  }
  func.func @transform_3(%arg0: i32) -> (i32, i32) {
    %c0_i32 = arith.constant 0 : i32
    %c0_i32_0 = arith.constant 0 : i32
    return %arg0, %c0_i32 : i32, i32
  }
}

module attributes {stable_mosaic.version = 11 : i64} {
  func.func @_dense_add_ln_kernel(%arg0: i32, %arg1: i32, %arg2: memref<16x32xf32, #tpu.memory_space<vmem>>, %arg3: memref<32x32xbf16, #tpu.memory_space<vmem>>, %arg4: memref<1x32xf32, #tpu.memory_space<vmem>>, %arg5: memref<16x32xf32, #tpu.memory_space<vmem>>, %arg6: memref<1x32xf32, #tpu.memory_space<vmem>>, %arg7: memref<1x32xf32, #tpu.memory_space<vmem>>, %arg8: memref<16x32xf32, #tpu.memory_space<vmem>>) attributes {dimension_semantics = [#tpu.dimension_semantics<parallel>, #tpu.dimension_semantics<arbitrary>], iteration_bounds = array<i64: 1, 1>, scalar_prefetch = 0 : i64, scratch_operands = 0 : i64, tpu.core_type = #tpu.core_type<tc>, window_params = [{transform_indices = @transform_0, window_bounds = array<i64: 16, 32>}, {transform_indices = @transform_1, window_bounds = array<i64: 32, 32>}, {pipeline_mode = #tpu.pipeline_mode<synchronous>, transform_indices = @transform_2, window_bounds = array<i64: 1, 32>}, {transform_indices = @transform_3, window_bounds = array<i64: 16, 32>}, {pipeline_mode = #tpu.pipeline_mode<synchronous>, transform_indices = @transform_4, window_bounds = array<i64: 1, 32>}, {pipeline_mode = #tpu.pipeline_mode<synchronous>, transform_indices = @transform_5, window_bounds = array<i64: 1, 32>}, {transform_indices = @transform_6, window_bounds = array<i64: 16, 32>}]} {
    %c0 = arith.constant 0 : index
    %c0_0 = arith.constant 0 : index
    %0 = vector.load %arg2[%c0, %c0_0] : memref<16x32xf32, #tpu.memory_space<vmem>>, vector<16x32xf32>
    %1 = arith.truncf %0 : vector<16x32xf32> to vector<16x32xbf16>
    %c0_1 = arith.constant 0 : index
    %c0_2 = arith.constant 0 : index
    %2 = vector.load %arg3[%c0_1, %c0_2] : memref<32x32xbf16, #tpu.memory_space<vmem>>, vector<32x32xbf16>
    %cst = arith.constant dense<0.000000e+00> : vector<16x32xf32>
    %3 = tpu.matmul %1, %2, %cst {dimension_numbers = #tpu.dot_dimension_numbers<[1], [0], [0], [1], [0, 0, 1, 1], [], []>} : vector<16x32xbf16>, vector<32x32xbf16>, vector<16x32xf32> -> vector<16x32xf32>
    %c0_3 = arith.constant 0 : index
    %c0_4 = arith.constant 0 : index
    %4 = vector.load %arg4[%c0_3, %c0_4] : memref<1x32xf32, #tpu.memory_space<vmem>>, vector<1x32xf32>
    %5 = vector.broadcast %4 : vector<1x32xf32> to vector<16x32xf32>
    %6 = arith.addf %3, %5 : vector<16x32xf32>
    %c0_5 = arith.constant 0 : index
    %c0_6 = arith.constant 0 : index
    %7 = vector.load %arg5[%c0_5, %c0_6] : memref<16x32xf32, #tpu.memory_space<vmem>>, vector<16x32xf32>
    %8 = arith.addf %6, %7 : vector<16x32xf32>
    %cst_7 = arith.constant dense<0.000000e+00> : vector<16xf32>
    %9 = vector.multi_reduction <add>, %8, %cst_7 [1] : vector<16x32xf32> to vector<16xf32>
    %10 = vector.shape_cast %9 : vector<16xf32> to vector<16x1xf32>
    %cst_8 = arith.constant 3.200000e+01 : f32
    %11 = vector.broadcast %cst_8 : f32 to vector<16x1xf32>
    %12 = arith.divf %10, %11 : vector<16x1xf32>
    %13 = vector.broadcast %12 : vector<16x1xf32> to vector<16x32xf32>
    %14 = arith.subf %8, %13 : vector<16x32xf32>
    %15 = arith.mulf %14, %14 : vector<16x32xf32>
    %cst_9 = arith.constant dense<0.000000e+00> : vector<16xf32>
    %16 = vector.multi_reduction <add>, %15, %cst_9 [1] : vector<16x32xf32> to vector<16xf32>
    %17 = vector.shape_cast %16 : vector<16xf32> to vector<16x1xf32>
    %cst_10 = arith.constant 3.200000e+01 : f32
    %18 = vector.broadcast %cst_10 : f32 to vector<16x1xf32>
    %19 = arith.divf %17, %18 : vector<16x1xf32>
    %20 = vector.broadcast %12 : vector<16x1xf32> to vector<16x32xf32>
    %21 = arith.subf %8, %20 : vector<16x32xf32>
    %cst_11 = arith.constant 9.99999996E-13 : f32
    %22 = vector.broadcast %cst_11 : f32 to vector<16x1xf32>
    %23 = arith.addf %19, %22 : vector<16x1xf32>
    %24 = math.rsqrt %23 : vector<16x1xf32>
    %25 = vector.broadcast %24 : vector<16x1xf32> to vector<16x32xf32>
    %26 = arith.mulf %21, %25 : vector<16x32xf32>
    %c0_12 = arith.constant 0 : index
    %c0_13 = arith.constant 0 : index
    %27 = vector.load %arg6[%c0_12, %c0_13] : memref<1x32xf32, #tpu.memory_space<vmem>>, vector<1x32xf32>
    %28 = vector.broadcast %27 : vector<1x32xf32> to vector<16x32xf32>
    %29 = arith.mulf %26, %28 : vector<16x32xf32>
    %c0_14 = arith.constant 0 : index
    %c0_15 = arith.constant 0 : index
    %30 = vector.load %arg7[%c0_14, %c0_15] : memref<1x32xf32, #tpu.memory_space<vmem>>, vector<1x32xf32>
    %31 = vector.broadcast %30 : vector<1x32xf32> to vector<16x32xf32>
    %32 = arith.addf %29, %31 : vector<16x32xf32>
    %c0_16 = arith.constant 0 : index
    %c0_17 = arith.constant 0 : index
    %33 = vector.load %arg8[%c0_16, %c0_17] : memref<16x32xf32, #tpu.memory_space<vmem>>, vector<16x32xf32>
    tpu.vector_store %arg8[%c0_16, %c0_17], %32 {strides = array<i32>} : memref<16x32xf32, #tpu.memory_space<vmem>>, vector<16x32xf32>,
    return
  }
  func.func @transform_0(%arg0: i32, %arg1: i32) -> (i32, i32) {
    %c0_i32 = arith.constant 0 : i32
    return %arg0, %arg1 : i32, i32
  }
  func.func @transform_1(%arg0: i32, %arg1: i32) -> (i32, i32) {
    %c0_i32 = arith.constant 0 : i32
    %c0_i32_0 = arith.constant 0 : i32
    return %arg1, %c0_i32 : i32, i32
  }
  func.func @transform_2(%arg0: i32, %arg1: i32) -> (i32, i32) {
    %c0_i32 = arith.constant 0 : i32
    %c0_i32_0 = arith.constant 0 : i32
    %c0_i32_1 = arith.constant 0 : i32
    return %c0_i32, %c0_i32_0 : i32, i32
  }
  func.func @transform_3(%arg0: i32, %arg1: i32) -> (i32, i32) {
    %c0_i32 = arith.constant 0 : i32
    %c0_i32_0 = arith.constant 0 : i32
    return %arg0, %c0_i32 : i32, i32
  }
  func.func @transform_4(%arg0: i32, %arg1: i32) -> (i32, i32) {
    %c0_i32 = arith.constant 0 : i32
    %c0_i32_0 = arith.constant 0 : i32
    %c0_i32_1 = arith.constant 0 : i32
    return %c0_i32, %c0_i32_0 : i32, i32
  }
  func.func @transform_5(%arg0: i32, %arg1: i32) -> (i32, i32) {
    %c0_i32 = arith.constant 0 : i32
    %c0_i32_0 = arith.constant 0 : i32
    %c0_i32_1 = arith.constant 0 : i32
    return %c0_i32, %c0_i32_0 : i32, i32
  }
  func.func @transform_6(%arg0: i32, %arg1: i32) -> (i32, i32) {
    %c0_i32 = arith.constant 0 : i32
    %c0_i32_0 = arith.constant 0 : i32
    return %arg0, %c0_i32 : i32, i32
  }
}

module attributes {stable_mosaic.version = 11 : i64} {
  func.func @_dense_kernel(%arg0: i32, %arg1: i32, %arg2: i32, %arg3: memref<16x32xf32, #tpu.memory_space<vmem>>, %arg4: memref<32x96xbf16, #tpu.memory_space<vmem>>, %arg5: memref<1x96xf32, #tpu.memory_space<vmem>>, %arg6: memref<16x96xf32, #tpu.memory_space<vmem>>) attributes {dimension_semantics = [#tpu.dimension_semantics<parallel>, #tpu.dimension_semantics<parallel>, #tpu.dimension_semantics<arbitrary>], iteration_bounds = array<i64: 1, 1, 1>, scalar_prefetch = 0 : i64, scratch_operands = 0 : i64, tpu.core_type = #tpu.core_type<tc>, window_params = [{transform_indices = @transform_0, window_bounds = array<i64: 16, 32>}, {transform_indices = @transform_1, window_bounds = array<i64: 32, 96>}, {transform_indices = @transform_2, window_bounds = array<i64: 1, 96>}, {transform_indices = @transform_3, window_bounds = array<i64: 16, 96>}]} {
    %c0 = arith.constant 0 : index
    %c0_0 = arith.constant 0 : index
    %0 = vector.load %arg3[%c0, %c0_0] : memref<16x32xf32, #tpu.memory_space<vmem>>, vector<16x32xf32>
    %1 = arith.truncf %0 : vector<16x32xf32> to vector<16x32xbf16>
    %c0_1 = arith.constant 0 : index
    %c0_2 = arith.constant 0 : index
    %2 = vector.load %arg4[%c0_1, %c0_2] : memref<32x96xbf16, #tpu.memory_space<vmem>>, vector<32x96xbf16>
    %cst = arith.constant dense<0.000000e+00> : vector<16x96xf32>
    %3 = tpu.matmul %1, %2, %cst {dimension_numbers = #tpu.dot_dimension_numbers<[1], [0], [0], [1], [0, 0, 1, 1], [], []>} : vector<16x32xbf16>, vector<32x96xbf16>, vector<16x96xf32> -> vector<16x96xf32>
    %c0_3 = arith.constant 0 : index
    %c0_4 = arith.constant 0 : index
    %4 = vector.load %arg5[%c0_3, %c0_4] : memref<1x96xf32, #tpu.memory_space<vmem>>, vector<1x96xf32>
    %5 = vector.broadcast %4 : vector<1x96xf32> to vector<16x96xf32>
    %6 = arith.addf %3, %5 : vector<16x96xf32>
    %c0_5 = arith.constant 0 : index
    %c0_6 = arith.constant 0 : index
    %7 = vector.load %arg6[%c0_5, %c0_6] : memref<16x96xf32, #tpu.memory_space<vmem>>, vector<16x96xf32>
    tpu.vector_store %arg6[%c0_5, %c0_6], %6 {strides = array<i32>} : memref<16x96xf32, #tpu.memory_space<vmem>>, vector<16x96xf32>,
    return
  }
  func.func @transform_0(%arg0: i32, %arg1: i32, %arg2: i32) -> (i32, i32) {
    %c0_i32 = arith.constant 0 : i32
    return %arg0, %arg2 : i32, i32
  }
  func.func @transform_1(%arg0: i32, %arg1: i32, %arg2: i32) -> (i32, i32) {
    %c0_i32 = arith.constant 0 : i32
    return %arg2, %arg1 : i32, i32
  }
  func.func @transform_2(%arg0: i32, %arg1: i32, %arg2: i32) -> (i32, i32) {
    %c0_i32 = arith.constant 0 : i32
    %c0_i32_0 = arith.constant 0 : i32
    return %c0_i32, %arg1 : i32, i32
  }
  func.func @transform_3(%arg0: i32, %arg1: i32, %arg2: i32) -> (i32, i32) {
    %c0_i32 = arith.constant 0 : i32
    return %arg0, %arg1 : i32, i32
  }
}

module attributes {stable_mosaic.version = 11 : i64} {
  func.func @_dense_kernel(%arg0: i32, %arg1: i32, %arg2: i32, %arg3: memref<16x32xf32, #tpu.memory_space<vmem>>, %arg4: memref<32x64xbf16, #tpu.memory_space<vmem>>, %arg5: memref<1x64xf32, #tpu.memory_space<vmem>>, %arg6: memref<16x64xf32, #tpu.memory_space<vmem>>) attributes {dimension_semantics = [#tpu.dimension_semantics<parallel>, #tpu.dimension_semantics<parallel>, #tpu.dimension_semantics<arbitrary>], iteration_bounds = array<i64: 1, 1, 1>, scalar_prefetch = 0 : i64, scratch_operands = 0 : i64, tpu.core_type = #tpu.core_type<tc>, window_params = [{transform_indices = @transform_0, window_bounds = array<i64: 16, 32>}, {transform_indices = @transform_1, window_bounds = array<i64: 32, 64>}, {transform_indices = @transform_2, window_bounds = array<i64: 1, 64>}, {transform_indices = @transform_3, window_bounds = array<i64: 16, 64>}]} {
    %c0 = arith.constant 0 : index
    %c0_0 = arith.constant 0 : index
    %0 = vector.load %arg3[%c0, %c0_0] : memref<16x32xf32, #tpu.memory_space<vmem>>, vector<16x32xf32>
    %1 = arith.truncf %0 : vector<16x32xf32> to vector<16x32xbf16>
    %c0_1 = arith.constant 0 : index
    %c0_2 = arith.constant 0 : index
    %2 = vector.load %arg4[%c0_1, %c0_2] : memref<32x64xbf16, #tpu.memory_space<vmem>>, vector<32x64xbf16>
    %cst = arith.constant dense<0.000000e+00> : vector<16x64xf32>
    %3 = tpu.matmul %1, %2, %cst {dimension_numbers = #tpu.dot_dimension_numbers<[1], [0], [0], [1], [0, 0, 1, 1], [], []>} : vector<16x32xbf16>, vector<32x64xbf16>, vector<16x64xf32> -> vector<16x64xf32>
    %c0_3 = arith.constant 0 : index
    %c0_4 = arith.constant 0 : index
    %4 = vector.load %arg5[%c0_3, %c0_4] : memref<1x64xf32, #tpu.memory_space<vmem>>, vector<1x64xf32>
    %5 = vector.broadcast %4 : vector<1x64xf32> to vector<16x64xf32>
    %6 = arith.addf %3, %5 : vector<16x64xf32>
    %cst_5 = arith.constant 5.000000e-01 : f32
    %7 = vector.broadcast %cst_5 : f32 to vector<16x64xf32>
    %8 = arith.mulf %7, %6 : vector<16x64xf32>
    %cst_6 = arith.constant 0.707106769 : f32
    %9 = vector.broadcast %cst_6 : f32 to vector<16x64xf32>
    %10 = arith.mulf %6, %9 : vector<16x64xf32>
    %11 = math.erf %10 : vector<16x64xf32>
    %cst_7 = arith.constant 1.000000e+00 : f32
    %12 = vector.broadcast %cst_7 : f32 to vector<16x64xf32>
    %13 = arith.addf %12, %11 : vector<16x64xf32>
    %14 = arith.mulf %8, %13 : vector<16x64xf32>
    %c0_8 = arith.constant 0 : index
    %c0_9 = arith.constant 0 : index
    %15 = vector.load %arg6[%c0_8, %c0_9] : memref<16x64xf32, #tpu.memory_space<vmem>>, vector<16x64xf32>
    tpu.vector_store %arg6[%c0_8, %c0_9], %14 {strides = array<i32>} : memref<16x64xf32, #tpu.memory_space<vmem>>, vector<16x64xf32>,
    return
  }
  func.func @transform_0(%arg0: i32, %arg1: i32, %arg2: i32) -> (i32, i32) {
    %c0_i32 = arith.constant 0 : i32
    return %arg0, %arg2 : i32, i32
  }
  func.func @transform_1(%arg0: i32, %arg1: i32, %arg2: i32) -> (i32, i32) {
    %c0_i32 = arith.constant 0 : i32
    return %arg2, %arg1 : i32, i32
  }
  func.func @transform_2(%arg0: i32, %arg1: i32, %arg2: i32) -> (i32, i32) {
    %c0_i32 = arith.constant 0 : i32
    %c0_i32_0 = arith.constant 0 : i32
    return %c0_i32, %arg1 : i32, i32
  }
  func.func @transform_3(%arg0: i32, %arg1: i32, %arg2: i32) -> (i32, i32) {
    %c0_i32 = arith.constant 0 : i32
    return %arg0, %arg1 : i32, i32
  }
}

module attributes {stable_mosaic.version = 11 : i64} {
  func.func @_dense_add_ln_kernel(%arg0: i32, %arg1: i32, %arg2: memref<16x64xf32, #tpu.memory_space<vmem>>, %arg3: memref<64x32xbf16, #tpu.memory_space<vmem>>, %arg4: memref<1x32xf32, #tpu.memory_space<vmem>>, %arg5: memref<16x32xf32, #tpu.memory_space<vmem>>, %arg6: memref<1x32xf32, #tpu.memory_space<vmem>>, %arg7: memref<1x32xf32, #tpu.memory_space<vmem>>, %arg8: memref<16x32xf32, #tpu.memory_space<vmem>>) attributes {dimension_semantics = [#tpu.dimension_semantics<parallel>, #tpu.dimension_semantics<arbitrary>], iteration_bounds = array<i64: 1, 1>, scalar_prefetch = 0 : i64, scratch_operands = 0 : i64, tpu.core_type = #tpu.core_type<tc>, window_params = [{transform_indices = @transform_0, window_bounds = array<i64: 16, 64>}, {transform_indices = @transform_1, window_bounds = array<i64: 64, 32>}, {pipeline_mode = #tpu.pipeline_mode<synchronous>, transform_indices = @transform_2, window_bounds = array<i64: 1, 32>}, {transform_indices = @transform_3, window_bounds = array<i64: 16, 32>}, {pipeline_mode = #tpu.pipeline_mode<synchronous>, transform_indices = @transform_4, window_bounds = array<i64: 1, 32>}, {pipeline_mode = #tpu.pipeline_mode<synchronous>, transform_indices = @transform_5, window_bounds = array<i64: 1, 32>}, {transform_indices = @transform_6, window_bounds = array<i64: 16, 32>}]} {
    %c0 = arith.constant 0 : index
    %c0_0 = arith.constant 0 : index
    %0 = vector.load %arg2[%c0, %c0_0] : memref<16x64xf32, #tpu.memory_space<vmem>>, vector<16x64xf32>
    %1 = arith.truncf %0 : vector<16x64xf32> to vector<16x64xbf16>
    %c0_1 = arith.constant 0 : index
    %c0_2 = arith.constant 0 : index
    %2 = vector.load %arg3[%c0_1, %c0_2] : memref<64x32xbf16, #tpu.memory_space<vmem>>, vector<64x32xbf16>
    %cst = arith.constant dense<0.000000e+00> : vector<16x32xf32>
    %3 = tpu.matmul %1, %2, %cst {dimension_numbers = #tpu.dot_dimension_numbers<[1], [0], [0], [1], [0, 0, 1, 1], [], []>} : vector<16x64xbf16>, vector<64x32xbf16>, vector<16x32xf32> -> vector<16x32xf32>
    %c0_3 = arith.constant 0 : index
    %c0_4 = arith.constant 0 : index
    %4 = vector.load %arg4[%c0_3, %c0_4] : memref<1x32xf32, #tpu.memory_space<vmem>>, vector<1x32xf32>
    %5 = vector.broadcast %4 : vector<1x32xf32> to vector<16x32xf32>
    %6 = arith.addf %3, %5 : vector<16x32xf32>
    %c0_5 = arith.constant 0 : index
    %c0_6 = arith.constant 0 : index
    %7 = vector.load %arg5[%c0_5, %c0_6] : memref<16x32xf32, #tpu.memory_space<vmem>>, vector<16x32xf32>
    %8 = arith.addf %6, %7 : vector<16x32xf32>
    %cst_7 = arith.constant dense<0.000000e+00> : vector<16xf32>
    %9 = vector.multi_reduction <add>, %8, %cst_7 [1] : vector<16x32xf32> to vector<16xf32>
    %10 = vector.shape_cast %9 : vector<16xf32> to vector<16x1xf32>
    %cst_8 = arith.constant 3.200000e+01 : f32
    %11 = vector.broadcast %cst_8 : f32 to vector<16x1xf32>
    %12 = arith.divf %10, %11 : vector<16x1xf32>
    %13 = vector.broadcast %12 : vector<16x1xf32> to vector<16x32xf32>
    %14 = arith.subf %8, %13 : vector<16x32xf32>
    %15 = arith.mulf %14, %14 : vector<16x32xf32>
    %cst_9 = arith.constant dense<0.000000e+00> : vector<16xf32>
    %16 = vector.multi_reduction <add>, %15, %cst_9 [1] : vector<16x32xf32> to vector<16xf32>
    %17 = vector.shape_cast %16 : vector<16xf32> to vector<16x1xf32>
    %cst_10 = arith.constant 3.200000e+01 : f32
    %18 = vector.broadcast %cst_10 : f32 to vector<16x1xf32>
    %19 = arith.divf %17, %18 : vector<16x1xf32>
    %20 = vector.broadcast %12 : vector<16x1xf32> to vector<16x32xf32>
    %21 = arith.subf %8, %20 : vector<16x32xf32>
    %cst_11 = arith.constant 9.99999996E-13 : f32
    %22 = vector.broadcast %cst_11 : f32 to vector<16x1xf32>
    %23 = arith.addf %19, %22 : vector<16x1xf32>
    %24 = math.rsqrt %23 : vector<16x1xf32>
    %25 = vector.broadcast %24 : vector<16x1xf32> to vector<16x32xf32>
    %26 = arith.mulf %21, %25 : vector<16x32xf32>
    %c0_12 = arith.constant 0 : index
    %c0_13 = arith.constant 0 : index
    %27 = vector.load %arg6[%c0_12, %c0_13] : memref<1x32xf32, #tpu.memory_space<vmem>>, vector<1x32xf32>
    %28 = vector.broadcast %27 : vector<1x32xf32> to vector<16x32xf32>
    %29 = arith.mulf %26, %28 : vector<16x32xf32>
    %c0_14 = arith.constant 0 : index
    %c0_15 = arith.constant 0 : index
    %30 = vector.load %arg7[%c0_14, %c0_15] : memref<1x32xf32, #tpu.memory_space<vmem>>, vector<1x32xf32>
    %31 = vector.broadcast %30 : vector<1x32xf32> to vector<16x32xf32>
    %32 = arith.addf %29, %31 : vector<16x32xf32>
    %c0_16 = arith.constant 0 : index
    %c0_17 = arith.constant 0 : index
    %33 = vector.load %arg8[%c0_16, %c0_17] : memref<16x32xf32, #tpu.memory_space<vmem>>, vector<16x32xf32>
    tpu.vector_store %arg8[%c0_16, %c0_17], %32 {strides = array<i32>} : memref<16x32xf32, #tpu.memory_space<vmem>>, vector<16x32xf32>,
    return
  }
  func.func @transform_0(%arg0: i32, %arg1: i32) -> (i32, i32) {
    %c0_i32 = arith.constant 0 : i32
    return %arg0, %arg1 : i32, i32
  }
  func.func @transform_1(%arg0: i32, %arg1: i32) -> (i32, i32) {
    %c0_i32 = arith.constant 0 : i32
    %c0_i32_0 = arith.constant 0 : i32
    return %arg1, %c0_i32 : i32, i32
  }
  func.func @transform_2(%arg0: i32, %arg1: i32) -> (i32, i32) {
    %c0_i32 = arith.constant 0 : i32
    %c0_i32_0 = arith.constant 0 : i32
    %c0_i32_1 = arith.constant 0 : i32
    return %c0_i32, %c0_i32_0 : i32, i32
  }
  func.func @transform_3(%arg0: i32, %arg1: i32) -> (i32, i32) {
    %c0_i32 = arith.constant 0 : i32
    %c0_i32_0 = arith.constant 0 : i32
    return %arg0, %c0_i32 : i32, i32
  }
  func.func @transform_4(%arg0: i32, %arg1: i32) -> (i32, i32) {
    %c0_i32 = arith.constant 0 : i32
    %c0_i32_0 = arith.constant 0 : i32
    %c0_i32_1 = arith.constant 0 : i32
    return %c0_i32, %c0_i32_0 : i32, i32
  }
  func.func @transform_5(%arg0: i32, %arg1: i32) -> (i32, i32) {
    %c0_i32 = arith.constant 0 : i32
    %c0_i32_0 = arith.constant 0 : i32
    %c0_i32_1 = arith.constant 0 : i32
    return %c0_i32, %c0_i32_0 : i32, i32
  }
  func.func @transform_6(%arg0: i32, %arg1: i32) -> (i32, i32) {
    %c0_i32 = arith.constant 0 : i32
    %c0_i32_0 = arith.constant 0 : i32
    return %arg0, %c0_i32 : i32, i32
  }
}

</mosaic_0001>

<llo_original>
// kernel: multi_label_classifier_forward.12
$region0: #{multi_label_classifier_forward.12}
  #allocation0 [shape = 'u32[]', space=smem, size = 0x4, offset = 0x4, fixed_abs, tag = 'smem constant byte address 0x4 - core index']
  #allocation1 [shape = 'u32[144,128]{1,0:T(1,128)}', space=vmem, size = 0x12000, scoped, tag = 'internal scratch']
  %s0 = inlined_call_operand.vmem [shape: f32[16,32], index: 0, kind: input, shape index: {}]
  %s1 = inlined_call_operand.vmem [shape: bf16[32,96], index: 1, kind: input, shape index: {}]
  %s2 = inlined_call_operand.vmem [shape: f32[1,96], index: 2, kind: input, shape index: {}]
  %s3 = inlined_call_operand.vmem [shape: f32[16,96], index: 3, kind: output, shape index: {}]
  %s4 = sld [smem:[#allocation0]]
  $region22: #{multi_label_classifier_forward.12} parent=0
    _
  %s6 = ssub.s32 1, %s4
  %s7 = scalar_select 0, %s6, %s4
  // Predicated region
  $region2: #{multi_label_classifier_forward.12} parent=0 // pred_check
    _
  $region3: #{multi_label_classifier_forward.12} parent=0 // pred_check_branch
    %9 = sbr.rel (0) target = $region5
  $region4: #{multi_label_classifier_forward.12} parent=0 // pred_region
    _
  $region5: #{multi_label_classifier_forward.12} parent=0 // pred_fallthru
    _
  // Predicated region
  $region6: #{multi_label_classifier_forward.12} parent=0 // pred_check
    _
  $region7: #{multi_label_classifier_forward.12} parent=0 // pred_check_branch
    %11 = sbr.rel (0) target = $region9
  $region8: #{multi_label_classifier_forward.12} parent=0 // pred_region
    _
  $region9: #{multi_label_classifier_forward.12} parent=0 // pred_fallthru
    _
  // Predicated region
  $region10: #{multi_label_classifier_forward.12} parent=0 // pred_check
    _
  $region11: #{multi_label_classifier_forward.12} parent=0 // pred_check_branch
    %13 = sbr.rel (0) target = $region13
  $region12: #{multi_label_classifier_forward.12} parent=0 // pred_region
    _
  $region13: #{multi_label_classifier_forward.12} parent=0 // pred_fallthru
    _
  %v15 = vld [vmem:[%s0] sm:$0xff]
  %v16 = vld [vmem:[%s0 + $0x8] sm:$0xff]
  %v17 = vpack.c.bf16 %v16, %v15
  %v18 = vld [vmem:[%s1] sm:$0xf]
  %v19 = vld [vmem:[%s1 + $0x4] sm:$0xf]
  %v20 = vld [vmem:[%s1 + $0x8] sm:$0xf]
  %v21 = vld [vmem:[%s1 + $0xc] sm:$0xf]
  %v22 = vld [vmem:[%s2] sm:$0x1]
  %v24 = vlaneseq
  %v25 = vshrl.u32 %v24, 7
  %v26 = vsub.s32 0, %v25
  %v27 = vrot.slane %v22, %v26
  %v33 = vunpack.c.l.b16 %v18
  %v34 = vunpack.c.l.b16 %v19
  %v35 = vunpack.c.l.b16 %v20
  %v36 = vunpack.c.l.b16 %v21
  %v37 = vpack.c.b16 %v34, %v33
  %v38 = vpack.c.b16 %v36, %v35
  %vm41 = vcmask 261120
  %v43 = vsel %vm41, %v17, 0
  %45 = vmatprep.subr.bf16.mxu0 0
  %46 = vmatpush1.bf16.msra.mxu0 0
  %47 = vmatprep.subr.bf16.mxu0 0
  %48 = vmatpush1.bf16.msra.mxu0 0
  %49 = vmatprep.subr.bf16.mxu0 0
  %50 = vmatpush1.bf16.msra.mxu0 0
  %51 = vmatprep.subr.bf16.mxu0 0
  %52 = vmatpush1.bf16.msra.mxu0 0
  %53 = vmatprep.subr.bf16.mxu0 0
  %54 = vmatpush1.bf16.msra.mxu0 0
  %55 = vmatprep.subr.bf16.mxu0 0
  %56 = vmatpush1.bf16.msra.mxu0 0
  %57 = vmatprep.subr.bf16.mxu0 0
  %58 = vmatpush1.bf16.msra.mxu0 %v38
  %59 = vmatprep.subr.bf16.mxu0 0
  %60 = vmatpush1.bf16.msra.mxu0 %v37
  %61 = vmatprep.subr.bf16.mxu0 0
  %62 = vmatpush2.bf16.msra.mxu0 0
  %63 = vmatprep.subr.bf16.mxu0 0
  %64 = vmatpush2.bf16.msra.mxu0 0
  %65 = vmatprep.subr.bf16.mxu0 0
  %66 = vmatpush2.bf16.msra.mxu0 0
  %67 = vmatprep.subr.bf16.mxu0 0
  %68 = vmatpush2.bf16.msra.mxu0 0
  %69 = vmatprep.subr.bf16.mxu0 0
  %70 = vmatpush2.bf16.msra.mxu0 0
  %71 = vmatprep.subr.bf16.mxu0 0
  %72 = vmatpush2.bf16.msra.mxu0 0
  %73 = vmatprep.subr.bf16.mxu0 0
  %74 = vmatpush2.bf16.msra.mxu0 0
  %75 = vmatprep.subr.bf16.mxu0 0
  %76 = vmatpush2.bf16.msra.mxu0 0
  %77 = vmatprep.mubr.bf16.mxu0 0
  %78 = vmatmul.mubr.bf16.gmra.mxu0 %v43
  %v79 = vpop.f32.mrf.mxu0
  %v80 = vadd.f32 %v27, %v79
  %v81 = vpop.f32.mrf.mxu0
  %v82 = vpop.f32.mrf.mxu0
  %v83 = vadd.f32 %v27, %v82
  %v84 = vpop.f32.mrf.mxu0
  %85 = vdwg.mxu0
  %vm86 = vcmask 785408
  %87 = vst.msk [vmem:[%s3] sm:$0xff] %vm86, %v80
  %88 = vst.msk [vmem:[%s3 + $0x8] sm:$0xff] %vm86, %v83
  // Predicated region
  $region14: #{multi_label_classifier_forward.12} parent=0 // pred_check
    _
  $region15: #{multi_label_classifier_forward.12} parent=0 // pred_check_branch
    %90 = sbr.rel (0) target = $region17
  $region16: #{multi_label_classifier_forward.12} parent=0 // pred_region
    _
  $region17: #{multi_label_classifier_forward.12} parent=0 // pred_fallthru
    _
  // Predicated region
  $region18: #{multi_label_classifier_forward.12} parent=0 // pred_check
    _
  $region19: #{multi_label_classifier_forward.12} parent=0 // pred_check_branch
    %92 = sbr.rel (0) target = $region21
  $region20: #{multi_label_classifier_forward.12} parent=0 // pred_region
    _
  $region21: #{multi_label_classifier_forward.12} parent=0 // pred_fallthru
    _

// kernel: multi_label_classifier_forward.11
$region0: #{multi_label_classifier_forward.11}
  #allocation0 [shape = 'u32[]', space=smem, size = 0x4, offset = 0x4, fixed_abs, tag = 'smem constant byte address 0x4 - core index']
  #allocation1 [shape = 'u32[144,128]{1,0:T(1,128)}', space=vmem, size = 0x12000, scoped, tag = 'internal scratch']
  %s0 = inlined_call_operand.vmem [shape: f32[16,32], index: 0, kind: input, shape index: {}]
  %s1 = inlined_call_operand.vmem [shape: f32[1,32], index: 1, kind: input, shape index: {}]
  %s2 = inlined_call_operand.vmem [shape: f32[1,32], index: 2, kind: input, shape index: {}]
  %s3 = inlined_call_operand.vmem [shape: f32[16,32], index: 3, kind: output, shape index: {}]
  %s4 = sld [smem:[#allocation0]]
  $region22: #{multi_label_classifier_forward.11} parent=0
    _
  %s6 = ssub.s32 1, %s4
  %s7 = scalar_select 0, %s6, %s4
  // Predicated region
  $region2: #{multi_label_classifier_forward.11} parent=0 // pred_check
    _
  $region3: #{multi_label_classifier_forward.11} parent=0 // pred_check_branch
    %9 = sbr.rel (0) target = $region5
  $region4: #{multi_label_classifier_forward.11} parent=0 // pred_region
    _
  $region5: #{multi_label_classifier_forward.11} parent=0 // pred_fallthru
    _
  // Predicated region
  $region6: #{multi_label_classifier_forward.11} parent=0 // pred_check
    _
  $region7: #{multi_label_classifier_forward.11} parent=0 // pred_check_branch
    %11 = sbr.rel (0) target = $region9
  $region8: #{multi_label_classifier_forward.11} parent=0 // pred_region
    _
  $region9: #{multi_label_classifier_forward.11} parent=0 // pred_fallthru
    _
  // Predicated region
  $region10: #{multi_label_classifier_forward.11} parent=0 // pred_check
    _
  $region11: #{multi_label_classifier_forward.11} parent=0 // pred_check_branch
    %13 = sbr.rel (0) target = $region13
  $region12: #{multi_label_classifier_forward.11} parent=0 // pred_region
    _
  $region13: #{multi_label_classifier_forward.11} parent=0 // pred_fallthru
    _
  %v14 = vld [vmem:[%s0] sm:$0xff]
  %v15 = vld [vmem:[%s0 + $0x8] sm:$0xff]
  %vm16 = vcmask 261120
  %v17 = vsel %vm16, %v14, 0.0
  %18 = vadd.xlane.f32.xlu0 %v17
  %v19 = vpop.xlane.xlu0 %18
  %v20 = vsel %vm16, %v15, 0.0
  %21 = vadd.xlane.f32.xlu0 %v20
  %v22 = vpop.xlane.xlu0 %21
  %v23 = vrcp.pop 32.0
  %v24 = vmul.f32 %v19, %v23
  %v25 = vmul.f32 %v22, %v23
  %v26 = vsub.f32 %v14, %v24
  %v27 = vsub.f32 %v15, %v25
  %v28 = vmul.f32 %v26, %v26
  %v29 = vmul.f32 %v27, %v27
  %v30 = vsel %vm16, %v28, 0.0
  %31 = vadd.xlane.f32.xlu0 %v30
  %v32 = vpop.xlane.xlu0 %31
  %v33 = vsel %vm16, %v29, 0.0
  %34 = vadd.xlane.f32.xlu0 %v33
  %v35 = vpop.xlane.xlu0 %34
  %v36 = vmul.f32 %v32, %v23
  %v37 = vmul.f32 %v35, %v23
  %v38 = vadd.f32 %v36, 1e-12
  %v39 = vadd.f32 %v37, 1e-12
  %v40 = vrsqrt.pop %v38
  %v41 = vrsqrt.pop %v39
  %v42 = vmul.f32 %v26, %v40
  %v43 = vmul.f32 %v27, %v41
  %v44 = vld [vmem:[%s1] sm:$0x1]
  %v46 = vlaneseq
  %v47 = vshrl.u32 %v46, 7
  %v48 = vsub.s32 0, %v47
  %v49 = vrot.slane %v44, %v48
  %v51 = vmul.f32 %v42, %v49
  %v52 = vmul.f32 %v43, %v49
  %v53 = vld [vmem:[%s2] sm:$0x1]
  %v55 = vlaneseq
  %v56 = vshrl.u32 %v55, 7
  %v57 = vsub.s32 0, %v56
  %v58 = vrot.slane %v53, %v57
  %v60 = vadd.f32 %v51, %v58
  %v61 = vadd.f32 %v52, %v58
  %62 = vst.msk [vmem:[%s3] sm:$0xff] %vm16, %v60
  %63 = vst.msk [vmem:[%s3 + $0x8] sm:$0xff] %vm16, %v61
  // Predicated region
  $region14: #{multi_label_classifier_forward.11} parent=0 // pred_check
    _
  $region15: #{multi_label_classifier_forward.11} parent=0 // pred_check_branch
    %65 = sbr.rel (0) target = $region17
  $region16: #{multi_label_classifier_forward.11} parent=0 // pred_region
    _
  $region17: #{multi_label_classifier_forward.11} parent=0 // pred_fallthru
    _
  // Predicated region
  $region18: #{multi_label_classifier_forward.11} parent=0 // pred_check
    _
  $region19: #{multi_label_classifier_forward.11} parent=0 // pred_check_branch
    %67 = sbr.rel (0) target = $region21
  $region20: #{multi_label_classifier_forward.11} parent=0 // pred_region
    _
  $region21: #{multi_label_classifier_forward.11} parent=0 // pred_fallthru
    _

// kernel: multi_label_classifier_forward.14
$region0: #{multi_label_classifier_forward.14}
  #allocation0 [shape = 'u32[]', space=smem, size = 0x4, offset = 0x4, fixed_abs, tag = 'smem constant byte address 0x4 - core index']
  #allocation1 [shape = 'u32[144,128]{1,0:T(1,128)}', space=vmem, size = 0x12000, scoped, tag = 'internal scratch']
  %s0 = inlined_call_operand.vmem [shape: f32[16,32], index: 0, kind: input, shape index: {}]
  %s1 = inlined_call_operand.vmem [shape: bf16[32,32], index: 1, kind: input, shape index: {}]
  %s2 = inlined_call_operand.vmem [shape: f32[1,32], index: 2, kind: input, shape index: {}]
  %s3 = inlined_call_operand.vmem [shape: f32[16,32], index: 3, kind: input, shape index: {}]
  %s4 = inlined_call_operand.vmem [shape: f32[1,32], index: 4, kind: input, shape index: {}]
  %s5 = inlined_call_operand.vmem [shape: f32[1,32], index: 5, kind: input, shape index: {}]
  %s6 = inlined_call_operand.vmem [shape: f32[16,32], index: 6, kind: output, shape index: {}]
  %s7 = sld [smem:[#allocation0]]
  $region34: #{multi_label_classifier_forward.14} parent=0
    _
  %s9 = ssub.s32 1, %s7
  %s10 = scalar_select 0, %s9, %s7
  // Predicated region
  $region2: #{multi_label_classifier_forward.14} parent=0 // pred_check
    _
  $region3: #{multi_label_classifier_forward.14} parent=0 // pred_check_branch
    %12 = sbr.rel (0) target = $region5
  $region4: #{multi_label_classifier_forward.14} parent=0 // pred_region
    _
  $region5: #{multi_label_classifier_forward.14} parent=0 // pred_fallthru
    _
  // Predicated region
  $region6: #{multi_label_classifier_forward.14} parent=0 // pred_check
    _
  $region7: #{multi_label_classifier_forward.14} parent=0 // pred_check_branch
    %14 = sbr.rel (0) target = $region9
  $region8: #{multi_label_classifier_forward.14} parent=0 // pred_region
    _
  $region9: #{multi_label_classifier_forward.14} parent=0 // pred_fallthru
    _
  // Predicated region
  $region10: #{multi_label_classifier_forward.14} parent=0 // pred_check
    _
  $region11: #{multi_label_classifier_forward.14} parent=0 // pred_check_branch
    %16 = sbr.rel (0) target = $region13
  $region12: #{multi_label_classifier_forward.14} parent=0 // pred_region
    _
  $region13: #{multi_label_classifier_forward.14} parent=0 // pred_fallthru
    _
  // Predicated region
  $region14: #{multi_label_classifier_forward.14} parent=0 // pred_check
    _
  $region15: #{multi_label_classifier_forward.14} parent=0 // pred_check_branch
    %18 = sbr.rel (0) target = $region17
  $region16: #{multi_label_classifier_forward.14} parent=0 // pred_region
    _
  $region17: #{multi_label_classifier_forward.14} parent=0 // pred_fallthru
    _
  // Predicated region
  $region18: #{multi_label_classifier_forward.14} parent=0 // pred_check
    _
  $region19: #{multi_label_classifier_forward.14} parent=0 // pred_check_branch
    %20 = sbr.rel (0) target = $region21
  $region20: #{multi_label_classifier_forward.14} parent=0 // pred_region
    _
  $region21: #{multi_label_classifier_forward.14} parent=0 // pred_fallthru
    _
  // Predicated region
  $region22: #{multi_label_classifier_forward.14} parent=0 // pred_check
    _
  $region23: #{multi_label_classifier_forward.14} parent=0 // pred_check_branch
    %22 = sbr.rel (0) target = $region25
  $region24: #{multi_label_classifier_forward.14} parent=0 // pred_region
    _
  $region25: #{multi_label_classifier_forward.14} parent=0 // pred_fallthru
    _
  %v24 = vld [vmem:[%s0] sm:$0xff]
  %v25 = vld [vmem:[%s0 + $0x8] sm:$0xff]
  %v26 = vpack.c.bf16 %v25, %v24
  %v27 = vld [vmem:[%s1] sm:$0xf]
  %v28 = vld [vmem:[%s1 + $0x4] sm:$0xf]
  %v29 = vld [vmem:[%s1 + $0x8] sm:$0xf]
  %v30 = vld [vmem:[%s1 + $0xc] sm:$0xf]
  %v31 = vld [vmem:[%s2] sm:$0x1]
  %v33 = vlaneseq
  %v34 = vshrl.u32 %v33, 7
  %v35 = vsub.s32 0, %v34
  %v36 = vrot.slane %v31, %v35
  %v42 = vunpack.c.l.b16 %v27
  %v43 = vunpack.c.l.b16 %v28
  %v44 = vunpack.c.l.b16 %v29
  %v45 = vunpack.c.l.b16 %v30
  %v46 = vpack.c.b16 %v43, %v42
  %v47 = vpack.c.b16 %v45, %v44
  %vm50 = vcmask 261120
  %v52 = vsel %vm50, %v26, 0
  %54 = vmatprep.subr.bf16.mxu0 0
  %55 = vmatpush1.bf16.msra.mxu0 0
  %56 = vmatprep.subr.bf16.mxu0 0
  %57 = vmatpush1.bf16.msra.mxu0 0
  %58 = vmatprep.subr.bf16.mxu0 0
  %59 = vmatpush1.bf16.msra.mxu0 0
  %60 = vmatprep.subr.bf16.mxu0 0
  %61 = vmatpush1.bf16.msra.mxu0 0
  %62 = vmatprep.subr.bf16.mxu0 0
  %63 = vmatpush1.bf16.msra.mxu0 0
  %64 = vmatprep.subr.bf16.mxu0 0
  %65 = vmatpush1.bf16.msra.mxu0 0
  %66 = vmatprep.subr.bf16.mxu0 0
  %67 = vmatpush1.bf16.msra.mxu0 %v47
  %68 = vmatprep.subr.bf16.mxu0 0
  %69 = vmatpush1.bf16.msra.mxu0 %v46
  %70 = vmatprep.subr.bf16.mxu0 0
  %71 = vmatpush2.bf16.msra.mxu0 0
  %72 = vmatprep.subr.bf16.mxu0 0
  %73 = vmatpush2.bf16.msra.mxu0 0
  %74 = vmatprep.subr.bf16.mxu0 0
  %75 = vmatpush2.bf16.msra.mxu0 0
  %76 = vmatprep.subr.bf16.mxu0 0
  %77 = vmatpush2.bf16.msra.mxu0 0
  %78 = vmatprep.subr.bf16.mxu0 0
  %79 = vmatpush2.bf16.msra.mxu0 0
  %80 = vmatprep.subr.bf16.mxu0 0
  %81 = vmatpush2.bf16.msra.mxu0 0
  %82 = vmatprep.subr.bf16.mxu0 0
  %83 = vmatpush2.bf16.msra.mxu0 0
  %84 = vmatprep.subr.bf16.mxu0 0
  %85 = vmatpush2.bf16.msra.mxu0 0
  %86 = vmatprep.mubr.bf16.mxu0 0
  %87 = vmatmul.mubr.bf16.gmra.mxu0 %v52
  %v88 = vpop.f32.mrf.mxu0
  %v89 = vadd.f32 %v36, %v88
  %v90 = vpop.f32.mrf.mxu0
  %v91 = vpop.f32.mrf.mxu0
  %v92 = vadd.f32 %v36, %v91
  %v93 = vpop.f32.mrf.mxu0
  %94 = vdwg.mxu0
  %v95 = vld [vmem:[%s3] sm:$0xff]
  %v96 = vld [vmem:[%s3 + $0x8] sm:$0xff]
  %v97 = vadd.f32 %v89, %v95
  %v98 = vadd.f32 %v92, %v96
  %v99 = vsel %vm50, %v97, 0.0
  %100 = vadd.xlane.f32.xlu0 %v99
  %v101 = vpop.xlane.xlu0 %100
  %v102 = vsel %vm50, %v98, 0.0
  %103 = vadd.xlane.f32.xlu0 %v102
  %v104 = vpop.xlane.xlu0 %103
  %v105 = vrcp.pop 32.0
  %v106 = vmul.f32 %v101, %v105
  %v107 = vmul.f32 %v104, %v105
  %v108 = vsub.f32 %v97, %v106
  %v109 = vsub.f32 %v98, %v107
  %v110 = vmul.f32 %v108, %v108
  %v111 = vmul.f32 %v109, %v109
  %v112 = vsel %vm50, %v110, 0.0
  %113 = vadd.xlane.f32.xlu0 %v112
  %v114 = vpop.xlane.xlu0 %113
  %v115 = vsel %vm50, %v111, 0.0
  %116 = vadd.xlane.f32.xlu0 %v115
  %v117 = vpop.xlane.xlu0 %116
  %v118 = vmul.f32 %v114, %v105
  %v119 = vmul.f32 %v117, %v105
  %v120 = vadd.f32 %v118, 1e-12
  %v121 = vadd.f32 %v119, 1e-12
  %v122 = vrsqrt.pop %v120
  %v123 = vrsqrt.pop %v121
  %v124 = vmul.f32 %v108, %v122
  %v125 = vmul.f32 %v109, %v123
  %v126 = vld [vmem:[%s4] sm:$0x1]
  %v128 = vlaneseq
  %v129 = vshrl.u32 %v128, 7
  %v130 = vsub.s32 0, %v129
  %v131 = vrot.slane %v126, %v130
  %v133 = vmul.f32 %v124, %v131
  %v134 = vmul.f32 %v125, %v131
  %v135 = vld [vmem:[%s5] sm:$0x1]
  %v137 = vlaneseq
  %v138 = vshrl.u32 %v137, 7
  %v139 = vsub.s32 0, %v138
  %v140 = vrot.slane %v135, %v139
  %v142 = vadd.f32 %v133, %v140
  %v143 = vadd.f32 %v134, %v140
  %144 = vst.msk [vmem:[%s6] sm:$0xff] %vm50, %v142
  %145 = vst.msk [vmem:[%s6 + $0x8] sm:$0xff] %vm50, %v143
  // Predicated region
  $region26: #{multi_label_classifier_forward.14} parent=0 // pred_check
    _
  $region27: #{multi_label_classifier_forward.14} parent=0 // pred_check_branch
    %147 = sbr.rel (0) target = $region29
  $region28: #{multi_label_classifier_forward.14} parent=0 // pred_region
    _
  $region29: #{multi_label_classifier_forward.14} parent=0 // pred_fallthru
    _
  // Predicated region
  $region30: #{multi_label_classifier_forward.14} parent=0 // pred_check
    _
  $region31: #{multi_label_classifier_forward.14} parent=0 // pred_check_branch
    %149 = sbr.rel (0) target = $region33
  $region32: #{multi_label_classifier_forward.14} parent=0 // pred_region
    _
  $region33: #{multi_label_classifier_forward.14} parent=0 // pred_fallthru
    _

// kernel: multi_label_classifier_forward.13
$region0: #{multi_label_classifier_forward.13}
  #allocation0 [shape = 'u32[]', space=smem, size = 0x4, offset = 0x4, fixed_abs, tag = 'smem constant byte address 0x4 - core index']
  #allocation1 [shape = 'u32[144,128]{1,0:T(1,128)}', space=vmem, size = 0x12000, scoped, tag = 'internal scratch']
  %s0 = inlined_call_operand.vmem [shape: f32[2,8,96], index: 0, kind: input, shape index: {}]
  %s1 = inlined_call_operand.vmem [shape: f32[2,1,8], index: 1, kind: input, shape index: {}]
  %s2 = inlined_call_operand.vmem [shape: f32[2,8,32], index: 2, kind: output, shape index: {}]
  %s3 = sld [smem:[#allocation0]]
  $region41: #{multi_label_classifier_forward.13} parent=0
    _
  %s5 = ssub.s32 1, %s3
  %s6 = scalar_select 0, %s5, %s3
  loop: start=0, step=1, limit=4
  $region2: #{multi_label_classifier_forward.13} parent=0 // loop_pre_header
    _
  $region3: #{multi_label_classifier_forward.13} parent=0 // loop_header
    %s8 = sphi 0, %s12
    %p9 = scmp.ge.s32.totalorder %s8, 4
    %s18 = sphi 0, %s20
    %s21 = sphi 0, %s18
    %s22 = sphi 0, %s21
    %s38 = sphi 0, %s22
    %s44 = sphi 0, %s46
    %s47 = sphi 0, %s44
    %s48 = sphi 0, %s47
    %s64 = sphi 0, %s48
    %s70 = sphi 0, %s72
    %s73 = sphi 0, %s70
    %s74 = sphi 0, %s73
    %s90 = sphi 0, %s74
  $region4: #{multi_label_classifier_forward.13} parent=0 // loop_header_branch
    %11 = sbr.rel (%p9) target = $region8
  $region5: #{multi_label_classifier_forward.13} parent=0 // loop_body
    %s13 = ssub.s32 %s8, 1
    %s14 = ssub.s32 %s8, 2
    %s15 = sadd.s32 %s8, 1
    %s16 = ssub.s32 %s8, %s15
    %p17 = scmp.eq.s32.totalorder %s16, 0
    %s19 = sadd.s32 %s18, 1
    %s20 = scalar_select %p17, %s18, %s19
    %p23 = pneg %p17
    %p24 = scmp.eq.s32.totalorder %s8, 1
    %p25 = por %p23, %p24
    %p26 = scmp.ne.s32.totalorder %s18, %s21
    %p27 = scmp.eq.s32.totalorder %s8, 0
    %p28 = por %p26, %p27
    %p29 = scmp.ne.s32.totalorder %s18, %s21
    %p30 = scmp.eq.s32.totalorder %s13, 1
    %p31 = por %p29, %p30
    %p32 = scmp.ne.s32.totalorder %s21, %s22
    %p33 = scmp.eq.s32.totalorder %s13, 0
    %p34 = por %p32, %p33
    %p35 = scmp.ne.s32.totalorder %s21, %s22
    %p36 = scmp.eq.s32.totalorder %s14, 1
    %p37 = por %p35, %p36
    %p39 = scmp.ne.s32.totalorder %s22, %s38
    %p40 = scmp.eq.s32.totalorder %s14, 0
    %p41 = por %p39, %p40
    %s42 = ssub.s32 %s8, %s15
    %p43 = scmp.eq.s32.totalorder %s42, 0
    %s45 = sadd.s32 %s44, 1
    %s46 = scalar_select %p43, %s44, %s45
    %p49 = pneg %p43
    %p50 = scmp.eq.s32.totalorder %s8, 1
    %p51 = por %p49, %p50
    %p52 = scmp.ne.s32.totalorder %s44, %s47
    %p53 = scmp.eq.s32.totalorder %s8, 0
    %p54 = por %p52, %p53
    %p55 = scmp.ne.s32.totalorder %s44, %s47
    %p56 = scmp.eq.s32.totalorder %s13, 1
    %p57 = por %p55, %p56
    %p58 = scmp.ne.s32.totalorder %s47, %s48
    %p59 = scmp.eq.s32.totalorder %s13, 0
    %p60 = por %p58, %p59
    %p61 = scmp.ne.s32.totalorder %s47, %s48
    %p62 = scmp.eq.s32.totalorder %s14, 1
    %p63 = por %p61, %p62
    %p65 = scmp.ne.s32.totalorder %s48, %s64
    %p66 = scmp.eq.s32.totalorder %s14, 0
    %p67 = por %p65, %p66
    %s68 = ssub.s32 %s8, %s15
    %p69 = scmp.eq.s32.totalorder %s68, 0
    %s71 = sadd.s32 %s70, 1
    %s72 = scalar_select %p69, %s70, %s71
    %p75 = pneg %p69
    %p76 = scmp.eq.s32.totalorder %s8, 1
    %p77 = por %p75, %p76
    %p78 = scmp.ne.s32.totalorder %s70, %s73
    %p79 = scmp.eq.s32.totalorder %s8, 0
    %p80 = por %p78, %p79
    %p81 = scmp.ne.s32.totalorder %s70, %s73
    %p82 = scmp.eq.s32.totalorder %s13, 1
    %p83 = por %p81, %p82
    %p84 = scmp.ne.s32.totalorder %s73, %s74
    %p85 = scmp.eq.s32.totalorder %s13, 0
    %p86 = por %p84, %p85
    %p87 = scmp.ne.s32.totalorder %s73, %s74
    %p88 = scmp.eq.s32.totalorder %s14, 1
    %p89 = por %p87, %p88
    %p91 = scmp.ne.s32.totalorder %s74, %s90
    %p92 = scmp.eq.s32.totalorder %s14, 0
    %p93 = por %p91, %p92
    %p94 = scmp.le.s32.totalorder 1, %s8
    %p95 = scmp.lt.s32.totalorder %s8, 3
    %p96 = pnand %p94, %p95
    %p97 = pneg %p96
    // Predicated region
    $region9: #{multi_label_classifier_forward.13} parent=5 // pred_check
      _
    $region10: #{multi_label_classifier_forward.13} parent=5 // pred_check_branch
      %99 = sbr.rel (%p96) target = $region12
    $region11: #{multi_label_classifier_forward.13} parent=5 // pred_region
      %s100 = ssub.s32 %s8, 1
    $region12: #{multi_label_classifier_forward.13} parent=5 // pred_fallthru
      _
    %p101 = scmp.lt.s32.totalorder %s8, 2
    // Predicated region
    $region13: #{multi_label_classifier_forward.13} parent=5 // pred_check
      %p102 = pneg %p101
    $region14: #{multi_label_classifier_forward.13} parent=5 // pred_check_branch
      %104 = sbr.rel (%p102) target = $region16
    $region15: #{multi_label_classifier_forward.13} parent=5 // pred_region
      // Predicated region
      $region17: #{multi_label_classifier_forward.13} parent=15 // pred_check
        %p105 = pneg %p28
      $region18: #{multi_label_classifier_forward.13} parent=15 // pred_check_branch
        %107 = sbr.rel (%p105) target = $region20
      $region19: #{multi_label_classifier_forward.13} parent=15 // pred_region
        %p108 = scmp.lt.s32.totalorder %s8, 1
        %s109 = scalar_select %p108, %s8, 1
        %s110 = smul.addr %s109, 8
        %s111 = scalar_lea.vmem %s0, %s110
      $region20: #{multi_label_classifier_forward.13} parent=15 // pred_fallthru
        _
      // Predicated region
      $region21: #{multi_label_classifier_forward.13} parent=15 // pred_check
        %p112 = pneg %p54
      $region22: #{multi_label_classifier_forward.13} parent=15 // pred_check_branch
        %114 = sbr.rel (%p112) target = $region24
      $region23: #{multi_label_classifier_forward.13} parent=15 // pred_region
        %p115 = scmp.lt.s32.totalorder %s8, 1
        %s116 = scalar_select %p115, %s8, 1
        %s117 = scalar_lea.vmem %s1, %s116
      $region24: #{multi_label_classifier_forward.13} parent=15 // pred_fallthru
        _
    $region16: #{multi_label_classifier_forward.13} parent=5 // pred_fallthru
      _
    %p118 = scmp.le.s32.totalorder 1, %s8
    %p119 = scmp.lt.s32.totalorder %s8, 3
    %p120 = pnand %p118, %p119
    %p121 = pneg %p120
    // Predicated region
    $region25: #{multi_label_classifier_forward.13} parent=5 // pred_check
      _
    $region26: #{multi_label_classifier_forward.13} parent=5 // pred_check_branch
      %123 = sbr.rel (%p120) target = $region28
    $region27: #{multi_label_classifier_forward.13} parent=5 // pred_region
      %s124 = ssub.s32 %s8, 1
      %p125 = scmp.lt.s32.totalorder %s13, 1
      %s126 = scalar_select %p125, %s13, 1
      %s127 = smul.addr %s126, 8
      %s128 = scalar_lea.vmem %s0, %s127
      %p129 = pneg %p34
      %p130 = pneg %p31
      %p131 = scmp.lt.s32.totalorder %s13, 1
      %s132 = scalar_select %p131, %s13, 1
      %s133 = scalar_lea.vmem %s1, %s132
      %p134 = pneg %p60
      %p135 = pneg %p57
      %p136 = pneg %p86
      %p137 = pneg %p83
      %p138 = scmp.lt.s32.totalorder %s13, 1
      %s139 = scalar_select %p138, %s13, 1
      %s140 = smul.addr %s139, 8
      %s141 = scalar_lea.vmem %s2, %s140
      %p142 = scmp.lt.s32.totalorder %s13, 1
      %s143 = scalar_select %p142, %s13, 1
      %s144 = smul.addr %s143, 8
      %s145 = scalar_lea.vmem %s0, %s144
      %p146 = scmp.lt.s32.totalorder %s13, 1
      %s147 = scalar_select %p146, %s13, 1
      %s148 = scalar_lea.vmem %s1, %s147
      %p149 = scmp.lt.s32.totalorder %s13, 1
      %s150 = scalar_select %p149, %s13, 1
      %s151 = smul.addr %s150, 8
      %s152 = scalar_lea.vmem %s2, %s151
      %v154 = vld [vmem:[%s145] sm:$0xff]
      %v155 = vld [vmem:[%s148] sm:$0x1]
      %v156 = vpack.c.bf16 %v154, %v154
      %v158 = vlaneseq
      %v159 = vshrl.u32 %v158, 7
      %v160 = vsub.s32 0, %v159
      %v161 = vrot.slane %v155, %v160
      %164 = vrot.lane.b32.xlu0 %v156, 96
      %v165 = vpop.permute.xlu0 %164
      %vm166 = vcmask 130048
      %v168 = vsel %vm166, %v156, 0
      %v171 = vsel %vm166, %v165, 0
      %173 = vmatprep.subr.bf16.mxu0 0
      %174 = vmatpush1.bf16.xpose.msra.mxu0 0
      %175 = vmatprep.subr.bf16.mxu0 0
      %176 = vmatpush1.bf16.xpose.msra.mxu0 0
      %177 = vmatprep.subr.bf16.mxu0 0
      %178 = vmatpush1.bf16.xpose.msra.mxu0 0
      %179 = vmatprep.subr.bf16.mxu0 0
      %180 = vmatpush1.bf16.xpose.msra.mxu0 0
      %181 = vmatprep.subr.bf16.mxu0 0
      %182 = vmatpush1.bf16.xpose.msra.mxu0 0
      %183 = vmatprep.subr.bf16.mxu0 0
      %184 = vmatpush1.bf16.xpose.msra.mxu0 0
      %185 = vmatprep.subr.bf16.mxu0 0
      %186 = vmatpush1.bf16.xpose.msra.mxu0 0
      %187 = vmatprep.subr.bf16.mxu0 0
      %188 = vmatpush1.bf16.xpose.msra.mxu0 %v171
      %189 = vmatprep.subr.bf16.mxu0 0
      %190 = vmatpush2.bf16.xpose.msra.mxu0 0
      %191 = vmatprep.subr.bf16.mxu0 0
      %192 = vmatpush2.bf16.xpose.msra.mxu0 0
      %193 = vmatprep.subr.bf16.mxu0 0
      %194 = vmatpush2.bf16.xpose.msra.mxu0 0
      %195 = vmatprep.subr.bf16.mxu0 0
      %196 = vmatpush2.bf16.xpose.msra.mxu0 0
      %197 = vmatprep.subr.bf16.mxu0 0
      %198 = vmatpush2.bf16.xpose.msra.mxu0 0
      %199 = vmatprep.subr.bf16.mxu0 0
      %200 = vmatpush2.bf16.xpose.msra.mxu0 0
      %201 = vmatprep.subr.bf16.mxu0 0
      %202 = vmatpush2.bf16.xpose.msra.mxu0 0
      %203 = vmatprep.subr.bf16.mxu0 0
      %204 = vmatpush2.bf16.xpose.msra.mxu0 0
      %205 = vmatprep.mubr.bf16.mxu0 0
      %206 = vmatmul.mubr.bf16.gmra.mxu0 %v168
      %v207 = vpop.f32.mrf.mxu0
      %v208 = vadd.f32 %v161, %v207
      %v209 = vpop.f32.mrf.mxu0
      %v210 = vpop.f32.mrf.mxu0
      %v211 = vpop.f32.mrf.mxu0
      %212 = vdwg.mxu0
      %vm213 = vcmask 64512
      %v214 = vsel %vm213, %v208, -inf
      %215 = vmax.xlane.f32.xlu0 %v214
      %v216 = vpop.xlane.xlu0 %215
      %v217 = vsub.f32 %v208, %v216
      %v218 = vmul.f32 %v217, 1.442695
      %v219 = vpow.pop %v218
      %v220 = vsel %vm213, %v219, 0.0
      %221 = vadd.xlane.f32.xlu0 %v220
      %v222 = vpop.xlane.xlu0 %221
      %v223 = vrcp.pop %v222
      %v224 = vmul.f32 %v219, %v223
      %v225 = vpack.c.bf16 %v224, %v224
      %226 = vrot.lane.b32.xlu0 %v156, 64
      %v227 = vpop.permute.xlu0 %226
      %v229 = vsel %vm213, %v225, 0
      %vm231 = vcmask 1043456
      %v233 = vsel %vm231, %v227, 0
      %235 = vmatprep.subr.bf16.mxu0 0
      %236 = vmatpush1.bf16.msra.mxu0 0
      %237 = vmatprep.subr.bf16.mxu0 0
      %238 = vmatpush1.bf16.msra.mxu0 0
      %239 = vmatprep.subr.bf16.mxu0 0
      %240 = vmatpush1.bf16.msra.mxu0 0
      %241 = vmatprep.subr.bf16.mxu0 0
      %242 = vmatpush1.bf16.msra.mxu0 0
      %243 = vmatprep.subr.bf16.mxu0 0
      %244 = vmatpush1.bf16.msra.mxu0 0
      %245 = vmatprep.subr.bf16.mxu0 0
      %246 = vmatpush1.bf16.msra.mxu0 0
      %247 = vmatprep.subr.bf16.mxu0 0
      %248 = vmatpush1.bf16.msra.mxu0 0
      %249 = vmatprep.subr.bf16.mxu0 0
      %250 = vmatpush1.bf16.msra.mxu0 %v233
      %251 = vmatprep.subr.bf16.mxu0 0
      %252 = vmatpush2.bf16.msra.mxu0 0
      %253 = vmatprep.subr.bf16.mxu0 0
      %254 = vmatpush2.bf16.msra.mxu0 0
      %255 = vmatprep.subr.bf16.mxu0 0
      %256 = vmatpush2.bf16.msra.mxu0 0
      %257 = vmatprep.subr.bf16.mxu0 0
      %258 = vmatpush2.bf16.msra.mxu0 0
      %259 = vmatprep.subr.bf16.mxu0 0
      %260 = vmatpush2.bf16.msra.mxu0 0
      %261 = vmatprep.subr.bf16.mxu0 0
      %262 = vmatpush2.bf16.msra.mxu0 0
      %263 = vmatprep.subr.bf16.mxu0 0
      %264 = vmatpush2.bf16.msra.mxu0 0
      %265 = vmatprep.subr.bf16.mxu0 0
      %266 = vmatpush2.bf16.msra.mxu0 0
      %267 = vmatprep.mubr.bf16.mxu0 0
      %268 = vmatmul.mubr.bf16.gmra.mxu0 %v229
      %v269 = vpop.f32.mrf.mxu0
      %v270 = vadd.f32 0.0, %v269
      %v271 = vpop.f32.mrf.mxu0
      %v272 = vpop.f32.mrf.mxu0
      %v273 = vpop.f32.mrf.mxu0
      %274 = vdwg.mxu0
      %275 = vst.msk [vmem:[%s152] sm:$0xff] %vm166, %v270
      %276 = vrot.lane.b32.xlu0 %v156, 112
      %v277 = vpop.permute.xlu0 %276
      %278 = vrot.lane.b32.xlu0 %v156, 80
      %v279 = vpop.permute.xlu0 %278
      %v281 = vsel %vm166, %v277, 0
      %v284 = vsel %vm166, %v279, 0
      %286 = vmatprep.subr.bf16.mxu0 0
      %287 = vmatpush1.bf16.xpose.msra.mxu0 0
      %288 = vmatprep.subr.bf16.mxu0 0
      %289 = vmatpush1.bf16.xpose.msra.mxu0 0
      %290 = vmatprep.subr.bf16.mxu0 0
      %291 = vmatpush1.bf16.xpose.msra.mxu0 0
      %292 = vmatprep.subr.bf16.mxu0 0
      %293 = vmatpush1.bf16.xpose.msra.mxu0 0
      %294 = vmatprep.subr.bf16.mxu0 0
      %295 = vmatpush1.bf16.xpose.msra.mxu0 0
      %296 = vmatprep.subr.bf16.mxu0 0
      %297 = vmatpush1.bf16.xpose.msra.mxu0 0
      %298 = vmatprep.subr.bf16.mxu0 0
      %299 = vmatpush1.bf16.xpose.msra.mxu0 0
      %300 = vmatprep.subr.bf16.mxu0 0
      %301 = vmatpush1.bf16.xpose.msra.mxu0 %v284
      %302 = vmatprep.subr.bf16.mxu0 0
      %303 = vmatpush2.bf16.xpose.msra.mxu0 0
      %304 = vmatprep.subr.bf16.mxu0 0
      %305 = vmatpush2.bf16.xpose.msra.mxu0 0
      %306 = vmatprep.subr.bf16.mxu0 0
      %307 = vmatpush2.bf16.xpose.msra.mxu0 0
      %308 = vmatprep.subr.bf16.mxu0 0
      %309 = vmatpush2.bf16.xpose.msra.mxu0 0
      %310 = vmatprep.subr.bf16.mxu0 0
      %311 = vmatpush2.bf16.xpose.msra.mxu0 0
      %312 = vmatprep.subr.bf16.mxu0 0
      %313 = vmatpush2.bf16.xpose.msra.mxu0 0
      %314 = vmatprep.subr.bf16.mxu0 0
      %315 = vmatpush2.bf16.xpose.msra.mxu0 0
      %316 = vmatprep.subr.bf16.mxu0 0
      %317 = vmatpush2.bf16.xpose.msra.mxu0 0
      %318 = vmatprep.mubr.bf16.mxu0 0
      %319 = vmatmul.mubr.bf16.gmra.mxu0 %v281
      %v320 = vpop.f32.mrf.mxu0
      %v321 = vadd.f32 %v161, %v320
      %v322 = vpop.f32.mrf.mxu0
      %v323 = vpop.f32.mrf.mxu0
      %v324 = vpop.f32.mrf.mxu0
      %325 = vdwg.mxu0
      %v326 = vsel %vm213, %v321, -inf
      %327 = vmax.xlane.f32.xlu0 %v326
      %v328 = vpop.xlane.xlu0 %327
      %v329 = vsub.f32 %v321, %v328
      %v330 = vmul.f32 %v329, 1.442695
      %v331 = vpow.pop %v330
      %v332 = vsel %vm213, %v331, 0.0
      %333 = vadd.xlane.f32.xlu0 %v332
      %v334 = vpop.xlane.xlu0 %333
      %v335 = vrcp.pop %v334
      %v336 = vmul.f32 %v331, %v335
      %v337 = vpack.c.bf16 %v336, %v336
      %338 = vrot.lane.b32.xlu0 %v156, 48
      %v339 = vpop.permute.xlu0 %338
      %v341 = vsel %vm213, %v337, 0
      %v344 = vsel %vm231, %v339, 0
      %346 = vmatprep.subr.bf16.mxu0 0
      %347 = vmatpush1.bf16.msra.mxu0 0
      %348 = vmatprep.subr.bf16.mxu0 0
      %349 = vmatpush1.bf16.msra.mxu0 0
      %350 = vmatprep.subr.bf16.mxu0 0
      %351 = vmatpush1.bf16.msra.mxu0 0
      %352 = vmatprep.subr.bf16.mxu0 0
      %353 = vmatpush1.bf16.msra.mxu0 0
      %354 = vmatprep.subr.bf16.mxu0 0
      %355 = vmatpush1.bf16.msra.mxu0 0
      %356 = vmatprep.subr.bf16.mxu0 0
      %357 = vmatpush1.bf16.msra.mxu0 0
      %358 = vmatprep.subr.bf16.mxu0 0
      %359 = vmatpush1.bf16.msra.mxu0 0
      %360 = vmatprep.subr.bf16.mxu0 0
      %361 = vmatpush1.bf16.msra.mxu0 %v344
      %362 = vmatprep.subr.bf16.mxu0 0
      %363 = vmatpush2.bf16.msra.mxu0 0
      %364 = vmatprep.subr.bf16.mxu0 0
      %365 = vmatpush2.bf16.msra.mxu0 0
      %366 = vmatprep.subr.bf16.mxu0 0
      %367 = vmatpush2.bf16.msra.mxu0 0
      %368 = vmatprep.subr.bf16.mxu0 0
      %369 = vmatpush2.bf16.msra.mxu0 0
      %370 = vmatprep.subr.bf16.mxu0 0
      %371 = vmatpush2.bf16.msra.mxu0 0
      %372 = vmatprep.subr.bf16.mxu0 0
      %373 = vmatpush2.bf16.msra.mxu0 0
      %374 = vmatprep.subr.bf16.mxu0 0
      %375 = vmatpush2.bf16.msra.mxu0 0
      %376 = vmatprep.subr.bf16.mxu0 0
      %377 = vmatpush2.bf16.msra.mxu0 0
      %378 = vmatprep.mubr.bf16.mxu0 0
      %379 = vmatmul.mubr.bf16.gmra.mxu0 %v341
      %v380 = vpop.f32.mrf.mxu0
      %v381 = vadd.f32 0.0, %v380
      %v382 = vpop.f32.mrf.mxu0
      %v383 = vpop.f32.mrf.mxu0
      %v384 = vpop.f32.mrf.mxu0
      %385 = vdwg.mxu0
      %387 = vrot.lane.b32.xlu0 %v381, 16
      %v388 = vpop.permute.xlu0 %387
      %vm390 = vcmask 261248
      %391 = vst.msk [vmem:[%s152] sm:$0xff] %vm390, %v388
      %p392 = scmp.lt.s32.totalorder %s13, 1
      %s393 = scalar_select %p392, %s13, 1
      %s394 = smul.addr %s393, 8
      %s395 = scalar_lea.vmem %s2, %s394
      // Predicated region
      $region29: #{multi_label_classifier_forward.13} parent=27 // pred_check
        %p396 = pneg %p83
      $region30: #{multi_label_classifier_forward.13} parent=27 // pred_check_branch
        %398 = sbr.rel (%p396) target = $region32
      $region31: #{multi_label_classifier_forward.13} parent=27 // pred_region
        _
      $region32: #{multi_label_classifier_forward.13} parent=27 // pred_fallthru
        _
    $region28: #{multi_label_classifier_forward.13} parent=5 // pred_fallthru
      _
    %p399 = scmp.le.s32.totalorder 2, %s8
    // Predicated region
    $region33: #{multi_label_classifier_forward.13} parent=5 // pred_check
      %p400 = pneg %p399
    $region34: #{multi_label_classifier_forward.13} parent=5 // pred_check_branch
      %402 = sbr.rel (%p400) target = $region36
    $region35: #{multi_label_classifier_forward.13} parent=5 // pred_region
      %s403 = ssub.s32 %s8, 2
      // Predicated region
      $region37: #{multi_label_classifier_forward.13} parent=35 // pred_check
        %p404 = pneg %p89
      $region38: #{multi_label_classifier_forward.13} parent=35 // pred_check_branch
        %406 = sbr.rel (%p404) target = $region40
      $region39: #{multi_label_classifier_forward.13} parent=35 // pred_region
        %p407 = scmp.lt.s32.totalorder %s14, 1
        %s408 = scalar_select %p407, %s14, 1
        %s409 = smul.addr %s408, 8
        %s410 = scalar_lea.vmem %s2, %s409
      $region40: #{multi_label_classifier_forward.13} parent=35 // pred_fallthru
        _
    $region36: #{multi_label_classifier_forward.13} parent=5 // pred_fallthru
      _
  $region6: #{multi_label_classifier_forward.13} parent=0 // loop_footer
    %s12 = sadd.s32 1, %s8
  $region7: #{multi_label_classifier_forward.13} parent=0 // loop_footer_branch
    %7 = sbr.rel target = $region3
  $region8: #{multi_label_classifier_forward.13} parent=0 // loop_exit
    _

// kernel: multi_label_classifier_forward.15
$region0: #{multi_label_classifier_forward.15}
  #allocation0 [shape = 'u32[]', space=smem, size = 0x4, offset = 0x4, fixed_abs, tag = 'smem constant byte address 0x4 - core index']
  #allocation1 [shape = 'u32[144,128]{1,0:T(1,128)}', space=vmem, size = 0x12000, scoped, tag = 'internal scratch']
  %s0 = inlined_call_operand.vmem [shape: f32[16,32], index: 0, kind: input, shape index: {}]
  %s1 = inlined_call_operand.vmem [shape: bf16[32,64], index: 1, kind: input, shape index: {}]
  %s2 = inlined_call_operand.vmem [shape: f32[1,64], index: 2, kind: input, shape index: {}]
  %s3 = inlined_call_operand.vmem [shape: f32[16,64], index: 3, kind: output, shape index: {}]
  %s4 = sld [smem:[#allocation0]]
  $region22: #{multi_label_classifier_forward.15} parent=0
    _
  %s6 = ssub.s32 1, %s4
  %s7 = scalar_select 0, %s6, %s4
  // Predicated region
  $region2: #{multi_label_classifier_forward.15} parent=0 // pred_check
    _
  $region3: #{multi_label_classifier_forward.15} parent=0 // pred_check_branch
    %9 = sbr.rel (0) target = $region5
  $region4: #{multi_label_classifier_forward.15} parent=0 // pred_region
    _
  $region5: #{multi_label_classifier_forward.15} parent=0 // pred_fallthru
    _
  // Predicated region
  $region6: #{multi_label_classifier_forward.15} parent=0 // pred_check
    _
  $region7: #{multi_label_classifier_forward.15} parent=0 // pred_check_branch
    %11 = sbr.rel (0) target = $region9
  $region8: #{multi_label_classifier_forward.15} parent=0 // pred_region
    _
  $region9: #{multi_label_classifier_forward.15} parent=0 // pred_fallthru
    _
  // Predicated region
  $region10: #{multi_label_classifier_forward.15} parent=0 // pred_check
    _
  $region11: #{multi_label_classifier_forward.15} parent=0 // pred_check_branch
    %13 = sbr.rel (0) target = $region13
  $region12: #{multi_label_classifier_forward.15} parent=0 // pred_region
    _
  $region13: #{multi_label_classifier_forward.15} parent=0 // pred_fallthru
    _
  %v15 = vld [vmem:[%s0] sm:$0xff]
  %v16 = vld [vmem:[%s0 + $0x8] sm:$0xff]
  %v17 = vpack.c.bf16 %v16, %v15
  %v18 = vld [vmem:[%s1] sm:$0xf]
  %v19 = vld [vmem:[%s1 + $0x4] sm:$0xf]
  %v20 = vld [vmem:[%s1 + $0x8] sm:$0xf]
  %v21 = vld [vmem:[%s1 + $0xc] sm:$0xf]
  %v22 = vld [vmem:[%s2] sm:$0x1]
  %v24 = vlaneseq
  %v25 = vshrl.u32 %v24, 7
  %v26 = vsub.s32 0, %v25
  %v27 = vrot.slane %v22, %v26
  %v33 = vunpack.c.l.b16 %v18
  %v34 = vunpack.c.l.b16 %v19
  %v35 = vunpack.c.l.b16 %v20
  %v36 = vunpack.c.l.b16 %v21
  %v37 = vpack.c.b16 %v34, %v33
  %v38 = vpack.c.b16 %v36, %v35
  %vm41 = vcmask 261120
  %v43 = vsel %vm41, %v17, 0
  %45 = vmatprep.subr.bf16.mxu0 0
  %46 = vmatpush1.bf16.msra.mxu0 0
  %47 = vmatprep.subr.bf16.mxu0 0
  %48 = vmatpush1.bf16.msra.mxu0 0
  %49 = vmatprep.subr.bf16.mxu0 0
  %50 = vmatpush1.bf16.msra.mxu0 0
  %51 = vmatprep.subr.bf16.mxu0 0
  %52 = vmatpush1.bf16.msra.mxu0 0
  %53 = vmatprep.subr.bf16.mxu0 0
  %54 = vmatpush1.bf16.msra.mxu0 0
  %55 = vmatprep.subr.bf16.mxu0 0
  %56 = vmatpush1.bf16.msra.mxu0 0
  %57 = vmatprep.subr.bf16.mxu0 0
  %58 = vmatpush1.bf16.msra.mxu0 %v38
  %59 = vmatprep.subr.bf16.mxu0 0
  %60 = vmatpush1.bf16.msra.mxu0 %v37
  %61 = vmatprep.subr.bf16.mxu0 0
  %62 = vmatpush2.bf16.msra.mxu0 0
  %63 = vmatprep.subr.bf16.mxu0 0
  %64 = vmatpush2.bf16.msra.mxu0 0
  %65 = vmatprep.subr.bf16.mxu0 0
  %66 = vmatpush2.bf16.msra.mxu0 0
  %67 = vmatprep.subr.bf16.mxu0 0
  %68 = vmatpush2.bf16.msra.mxu0 0
  %69 = vmatprep.subr.bf16.mxu0 0
  %70 = vmatpush2.bf16.msra.mxu0 0
  %71 = vmatprep.subr.bf16.mxu0 0
  %72 = vmatpush2.bf16.msra.mxu0 0
  %73 = vmatprep.subr.bf16.mxu0 0
  %74 = vmatpush2.bf16.msra.mxu0 0
  %75 = vmatprep.subr.bf16.mxu0 0
  %76 = vmatpush2.bf16.msra.mxu0 0
  %77 = vmatprep.mubr.bf16.mxu0 0
  %78 = vmatmul.mubr.bf16.gmra.mxu0 %v43
  %v79 = vpop.f32.mrf.mxu0
  %v80 = vadd.f32 %v27, %v79
  %v81 = vpop.f32.mrf.mxu0
  %v82 = vpop.f32.mrf.mxu0
  %v83 = vadd.f32 %v27, %v82
  %v84 = vpop.f32.mrf.mxu0
  %85 = vdwg.mxu0
  %v86 = vmul.f32 %v80, 0.5
  %v87 = vmul.f32 %v83, 0.5
  %v88 = vmul.f32 %v80, 0.70710677
  %v89 = vmul.f32 %v83, 0.70710677
  %v90 = verf.f32.pop %v88
  %v91 = verf.f32.pop %v89
  %v92 = vadd.f32 %v90, 1.0
  %v93 = vadd.f32 %v91, 1.0
  %v94 = vmul.f32 %v86, %v92
  %v95 = vmul.f32 %v87, %v93
  %vm96 = vcmask 523264
  %97 = vst.msk [vmem:[%s3] sm:$0xff] %vm96, %v94
  %98 = vst.msk [vmem:[%s3 + $0x8] sm:$0xff] %vm96, %v95
  // Predicated region
  $region14: #{multi_label_classifier_forward.15} parent=0 // pred_check
    _
  $region15: #{multi_label_classifier_forward.15} parent=0 // pred_check_branch
    %100 = sbr.rel (0) target = $region17
  $region16: #{multi_label_classifier_forward.15} parent=0 // pred_region
    _
  $region17: #{multi_label_classifier_forward.15} parent=0 // pred_fallthru
    _
  // Predicated region
  $region18: #{multi_label_classifier_forward.15} parent=0 // pred_check
    _
  $region19: #{multi_label_classifier_forward.15} parent=0 // pred_check_branch
    %102 = sbr.rel (0) target = $region21
  $region20: #{multi_label_classifier_forward.15} parent=0 // pred_region
    _
  $region21: #{multi_label_classifier_forward.15} parent=0 // pred_fallthru
    _

// kernel: multi_label_classifier_forward.16
$region0: #{multi_label_classifier_forward.16}
  #allocation0 [shape = 'u32[]', space=smem, size = 0x4, offset = 0x4, fixed_abs, tag = 'smem constant byte address 0x4 - core index']
  #allocation1 [shape = 'u32[144,128]{1,0:T(1,128)}', space=vmem, size = 0x12000, scoped, tag = 'internal scratch']
  %s0 = inlined_call_operand.vmem [shape: f32[16,64], index: 0, kind: input, shape index: {}]
  %s1 = inlined_call_operand.vmem [shape: bf16[64,32], index: 1, kind: input, shape index: {}]
  %s2 = inlined_call_operand.vmem [shape: f32[1,32], index: 2, kind: input, shape index: {}]
  %s3 = inlined_call_operand.vmem [shape: f32[16,32], index: 3, kind: input, shape index: {}]
  %s4 = inlined_call_operand.vmem [shape: f32[1,32], index: 4, kind: input, shape index: {}]
  %s5 = inlined_call_operand.vmem [shape: f32[1,32], index: 5, kind: input, shape index: {}]
  %s6 = inlined_call_operand.vmem [shape: f32[16,32], index: 6, kind: output, shape index: {}]
  %s7 = sld [smem:[#allocation0]]
  $region34: #{multi_label_classifier_forward.16} parent=0
    _
  %s9 = ssub.s32 1, %s7
  %s10 = scalar_select 0, %s9, %s7
  // Predicated region
  $region2: #{multi_label_classifier_forward.16} parent=0 // pred_check
    _
  $region3: #{multi_label_classifier_forward.16} parent=0 // pred_check_branch
    %12 = sbr.rel (0) target = $region5
  $region4: #{multi_label_classifier_forward.16} parent=0 // pred_region
    _
  $region5: #{multi_label_classifier_forward.16} parent=0 // pred_fallthru
    _
  // Predicated region
  $region6: #{multi_label_classifier_forward.16} parent=0 // pred_check
    _
  $region7: #{multi_label_classifier_forward.16} parent=0 // pred_check_branch
    %14 = sbr.rel (0) target = $region9
  $region8: #{multi_label_classifier_forward.16} parent=0 // pred_region
    _
  $region9: #{multi_label_classifier_forward.16} parent=0 // pred_fallthru
    _
  // Predicated region
  $region10: #{multi_label_classifier_forward.16} parent=0 // pred_check
    _
  $region11: #{multi_label_classifier_forward.16} parent=0 // pred_check_branch
    %16 = sbr.rel (0) target = $region13
  $region12: #{multi_label_classifier_forward.16} parent=0 // pred_region
    _
  $region13: #{multi_label_classifier_forward.16} parent=0 // pred_fallthru
    _
  // Predicated region
  $region14: #{multi_label_classifier_forward.16} parent=0 // pred_check
    _
  $region15: #{multi_label_classifier_forward.16} parent=0 // pred_check_branch
    %18 = sbr.rel (0) target = $region17
  $region16: #{multi_label_classifier_forward.16} parent=0 // pred_region
    _
  $region17: #{multi_label_classifier_forward.16} parent=0 // pred_fallthru
    _
  // Predicated region
  $region18: #{multi_label_classifier_forward.16} parent=0 // pred_check
    _
  $region19: #{multi_label_classifier_forward.16} parent=0 // pred_check_branch
    %20 = sbr.rel (0) target = $region21
  $region20: #{multi_label_classifier_forward.16} parent=0 // pred_region
    _
  $region21: #{multi_label_classifier_forward.16} parent=0 // pred_fallthru
    _
  // Predicated region
  $region22: #{multi_label_classifier_forward.16} parent=0 // pred_check
    _
  $region23: #{multi_label_classifier_forward.16} parent=0 // pred_check_branch
    %22 = sbr.rel (0) target = $region25
  $region24: #{multi_label_classifier_forward.16} parent=0 // pred_region
    _
  $region25: #{multi_label_classifier_forward.16} parent=0 // pred_fallthru
    _
  %v24 = vld [vmem:[%s0] sm:$0xff]
  %v25 = vld [vmem:[%s0 + $0x8] sm:$0xff]
  %v26 = vpack.c.bf16 %v25, %v24
  %v27 = vld [vmem:[%s1] sm:$0xf]
  %v28 = vld [vmem:[%s1 + $0x4] sm:$0xf]
  %v29 = vld [vmem:[%s1 + $0x8] sm:$0xf]
  %v30 = vld [vmem:[%s1 + $0xc] sm:$0xf]
  %v31 = vld [vmem:[%s1 + $0x10] sm:$0xf]
  %v32 = vld [vmem:[%s1 + $0x14] sm:$0xf]
  %v33 = vld [vmem:[%s1 + $0x18] sm:$0xf]
  %v34 = vld [vmem:[%s1 + $0x1c] sm:$0xf]
  %v35 = vld [vmem:[%s2] sm:$0x1]
  %v37 = vlaneseq
  %v38 = vshrl.u32 %v37, 7
  %v39 = vsub.s32 0, %v38
  %v40 = vrot.slane %v35, %v39
  %v50 = vunpack.c.l.b16 %v27
  %v51 = vunpack.c.l.b16 %v28
  %v52 = vunpack.c.l.b16 %v29
  %v53 = vunpack.c.l.b16 %v30
  %v54 = vunpack.c.l.b16 %v31
  %v55 = vunpack.c.l.b16 %v32
  %v56 = vunpack.c.l.b16 %v33
  %v57 = vunpack.c.l.b16 %v34
  %v58 = vpack.c.b16 %v51, %v50
  %v59 = vpack.c.b16 %v53, %v52
  %v60 = vpack.c.b16 %v55, %v54
  %v61 = vpack.c.b16 %v57, %v56
  %vm66 = vcmask 523264
  %v68 = vsel %vm66, %v26, 0
  %70 = vmatprep.subr.bf16.mxu0 0
  %71 = vmatpush1.bf16.msra.mxu0 0
  %72 = vmatprep.subr.bf16.mxu0 0
  %73 = vmatpush1.bf16.msra.mxu0 0
  %74 = vmatprep.subr.bf16.mxu0 0
  %75 = vmatpush1.bf16.msra.mxu0 0
  %76 = vmatprep.subr.bf16.mxu0 0
  %77 = vmatpush1.bf16.msra.mxu0 0
  %78 = vmatprep.subr.bf16.mxu0 0
  %79 = vmatpush1.bf16.msra.mxu0 %v61
  %80 = vmatprep.subr.bf16.mxu0 0
  %81 = vmatpush1.bf16.msra.mxu0 %v60
  %82 = vmatprep.subr.bf16.mxu0 0
  %83 = vmatpush1.bf16.msra.mxu0 %v59
  %84 = vmatprep.subr.bf16.mxu0 0
  %85 = vmatpush1.bf16.msra.mxu0 %v58
  %86 = vmatprep.subr.bf16.mxu0 0
  %87 = vmatpush2.bf16.msra.mxu0 0
  %88 = vmatprep.subr.bf16.mxu0 0
  %89 = vmatpush2.bf16.msra.mxu0 0
  %90 = vmatprep.subr.bf16.mxu0 0
  %91 = vmatpush2.bf16.msra.mxu0 0
  %92 = vmatprep.subr.bf16.mxu0 0
  %93 = vmatpush2.bf16.msra.mxu0 0
  %94 = vmatprep.subr.bf16.mxu0 0
  %95 = vmatpush2.bf16.msra.mxu0 0
  %96 = vmatprep.subr.bf16.mxu0 0
  %97 = vmatpush2.bf16.msra.mxu0 0
  %98 = vmatprep.subr.bf16.mxu0 0
  %99 = vmatpush2.bf16.msra.mxu0 0
  %100 = vmatprep.subr.bf16.mxu0 0
  %101 = vmatpush2.bf16.msra.mxu0 0
  %102 = vmatprep.mubr.bf16.mxu0 0
  %103 = vmatmul.mubr.bf16.gmra.mxu0 %v68
  %v104 = vpop.f32.mrf.mxu0
  %v105 = vadd.f32 %v40, %v104
  %v106 = vpop.f32.mrf.mxu0
  %v107 = vpop.f32.mrf.mxu0
  %v108 = vadd.f32 %v40, %v107
  %v109 = vpop.f32.mrf.mxu0
  %110 = vdwg.mxu0
  %v111 = vld [vmem:[%s3] sm:$0xff]
  %v112 = vld [vmem:[%s3 + $0x8] sm:$0xff]
  %v113 = vadd.f32 %v105, %v111
  %v114 = vadd.f32 %v108, %v112
  %vm115 = vcmask 261120
  %v116 = vsel %vm115, %v113, 0.0
  %117 = vadd.xlane.f32.xlu0 %v116
  %v118 = vpop.xlane.xlu0 %117
  %v119 = vsel %vm115, %v114, 0.0
  %120 = vadd.xlane.f32.xlu0 %v119
  %v121 = vpop.xlane.xlu0 %120
  %v122 = vrcp.pop 32.0
  %v123 = vmul.f32 %v118, %v122
  %v124 = vmul.f32 %v121, %v122
  %v125 = vsub.f32 %v113, %v123
  %v126 = vsub.f32 %v114, %v124
  %v127 = vmul.f32 %v125, %v125
  %v128 = vmul.f32 %v126, %v126
  %v129 = vsel %vm115, %v127, 0.0
  %130 = vadd.xlane.f32.xlu0 %v129
  %v131 = vpop.xlane.xlu0 %130
  %v132 = vsel %vm115, %v128, 0.0
  %133 = vadd.xlane.f32.xlu0 %v132
  %v134 = vpop.xlane.xlu0 %133
  %v135 = vmul.f32 %v131, %v122
  %v136 = vmul.f32 %v134, %v122
  %v137 = vadd.f32 %v135, 1e-12
  %v138 = vadd.f32 %v136, 1e-12
  %v139 = vrsqrt.pop %v137
  %v140 = vrsqrt.pop %v138
  %v141 = vmul.f32 %v125, %v139
  %v142 = vmul.f32 %v126, %v140
  %v143 = vld [vmem:[%s4] sm:$0x1]
  %v145 = vlaneseq
  %v146 = vshrl.u32 %v145, 7
  %v147 = vsub.s32 0, %v146
  %v148 = vrot.slane %v143, %v147
  %v150 = vmul.f32 %v141, %v148
  %v151 = vmul.f32 %v142, %v148
  %v152 = vld [vmem:[%s5] sm:$0x1]
  %v154 = vlaneseq
  %v155 = vshrl.u32 %v154, 7
  %v156 = vsub.s32 0, %v155
  %v157 = vrot.slane %v152, %v156
  %v159 = vadd.f32 %v150, %v157
  %v160 = vadd.f32 %v151, %v157
  %161 = vst.msk [vmem:[%s6] sm:$0xff] %vm115, %v159
  %162 = vst.msk [vmem:[%s6 + $0x8] sm:$0xff] %vm115, %v160
  // Predicated region
  $region26: #{multi_label_classifier_forward.16} parent=0 // pred_check
    _
  $region27: #{multi_label_classifier_forward.16} parent=0 // pred_check_branch
    %164 = sbr.rel (0) target = $region29
  $region28: #{multi_label_classifier_forward.16} parent=0 // pred_region
    _
  $region29: #{multi_label_classifier_forward.16} parent=0 // pred_fallthru
    _
  // Predicated region
  $region30: #{multi_label_classifier_forward.16} parent=0 // pred_check
    _
  $region31: #{multi_label_classifier_forward.16} parent=0 // pred_check_branch
    %166 = sbr.rel (0) target = $region33
  $region32: #{multi_label_classifier_forward.16} parent=0 // pred_region
    _
  $region33: #{multi_label_classifier_forward.16} parent=0 // pred_fallthru
    _

</llo_original>
